<compile_context>
chip_gen: v7x
topology: tpu7x:2x2x1
jax: 0.10.0
libtpu: 0.0.40
codegen_flags: <defaults>
</compile_context>

<pallas_src>
import functools

import numpy as np

import jax
import jax.numpy as jnp
from jax import lax
from jax.experimental import pallas as pl
from jax.experimental.pallas import tpu as pltpu


def _round_up(x, m):
    return (x + m - 1) // m * m


def _hswish(y):
    return y * jnp.clip(y + 3.0, 0.0, 6.0) * (1.0 / 6.0)


def _relu(y):
    return jnp.maximum(y, 0.0)


def _hsigmoid(y):
    return jnp.clip(y + 3.0, 0.0, 6.0) * (1.0 / 6.0)


@functools.lru_cache(maxsize=None)
def _roll_mode():
    """Probe pltpu.roll's lane-rotation convention once on-device.

    Returns "np" if pltpu.roll matches np.roll, "neg" if it uses the opposite
    sign convention, and "concat" (slice+concat rotation fallback) if the
    primitive cannot be lowered.
    """
    width, shift = 384, 203                      # multi-vreg lane dim, odd shift

    def k(x_ref, o_ref):
        o_ref[...] = pltpu.roll(x_ref[...], shift, 1)

    x = np.tile(np.arange(width, dtype=np.float32)[None, :], (8, 1))
    try:
        y = np.asarray(pl.pallas_call(
            k, out_shape=jax.ShapeDtypeStruct((8, width), jnp.float32)
        )(jnp.asarray(x)))
    except Exception:
        return "concat"
    if np.array_equal(y, np.roll(x, shift, axis=1)):
        return "np"
    if np.array_equal(y, np.roll(x, -shift, axis=1)):
        return "neg"
    return "concat"


def _rot_left(x, off, width, mode):
    """result[:, n] = x[:, (n + off) % width]   (off is a static Python int)."""
    if off == 0:
        return x
    if mode == "np":       # pltpu.roll moves data towards higher lane indices
        return pltpu.roll(x, width - off, 1)
    if mode == "neg":      # pltpu.roll moves data towards lower lane indices
        return pltpu.roll(x, off, 1)
    return jnp.concatenate([x[:, off:], x[:, :off]], axis=1)


def _bottleneck_kernel(x_ref, p_ref, s_ref, w1_ref, b1_ref, wdw_ref, b2_ref,
                       w3_ref, b3_ref, *rest,
                       nb, K, dilation, Wp, L, roll_mode,
                       use_hswish, use_se, use_residual):
    """Fused Bottleneck forward for `nb` images, channel-major / lane-dense.

    x_ref   : (nb, Cin, Lu)   unpadded input, HW flat on lanes (lane tail zeroed)
    p_ref   : (Lu, L)   f32   exact 0/1 pad matrix: unpadded flat -> zero-padded flat
    s_ref   : (L, Lout) f32   exact 0/1 selection: padded stride-1 flat -> compact
                              strided, lane-dense output columns
    w1_ref  : (Cexp, Cin)     1x1 expand conv, BN1 scale folded in
    b1_ref  : (Cexp, 1)       BN1 shift
    wdw_ref : (Cexp, K*K) f32 depthwise taps, BN2 scale folded in
    b2_ref  : (Cexp, 1)       BN2 shift
    w3_ref  : (Cout, Cexp)    1x1 project conv, BN3 scale folded in
    b3_ref  : (Cout, 1)       BN3 shift
    rest    : (vvec (Lout,1), wse1 (Cr,Cexp), wse2 (Cexp,Cr)) if use_se, + o_ref
    o_ref   : (nb, Cout, Lout) compact strided output (cols >= Ho*Wo are junk)
    """
    if use_se:
        vvec_ref, wse1_ref, wse2_ref, o_ref = rest
    else:
        (o_ref,) = rest

    act = _hswish if use_hswish else _relu
    cdt = w1_ref.dtype

    w1 = w1_ref[...]
    b1 = b1_ref[...]
    pmat = p_ref[...]
    smat = s_ref[...]
    wdw = wdw_ref[...]
    b2 = b2_ref[...]
    w3 = w3_ref[...]
    b3 = b3_ref[...]

    for i in range(nb):                                   # small, unrolled
        xin = x_ref[i]                                    # (Cin, Lu), x.dtype

        # ---- stage 1: 1x1 expand (+folded BN1) + act, unpadded layout --------
        h1u = act(jnp.dot(w1, xin.astype(cdt),
                          preferred_element_type=jnp.float32) + b1)   # (Cexp,Lu)

        # ---- exact zero-padding via 0/1 selection matmul (idle MXU) ----------
        h1 = jnp.dot(h1u, pmat, preferred_element_type=jnp.float32)   # (Cexp, L)

        # ---- stage 2: depthwise KxK: XLU roll + VPU FMA, f32 accumulate ------
        acc = h1 * wdw[:, 0:1]                            # tap (0,0) inits acc
        for kh in range(K):
            for kw in range(K):
                if kh == 0 and kw == 0:
                    continue
                t = kh * K + kw
                off = kh * dilation * Wp + kw * dilation
                acc = acc + _rot_left(h1, off, L, roll_mode) * wdw[:, t:t + 1]

        # ---- compact: strip garbage lanes + stride subsample (idle MXU) ------
        h2 = jnp.dot(acc, smat, preferred_element_type=jnp.float32) + b2

        # ---- squeeze-excite (PyTorch order: BN2 -> SE -> act) ----------------
        if use_se:
            pooled = jnp.dot(h2, vvec_ref[...],
                             preferred_element_type=jnp.float32)      # (Cexp,1)
            s1 = _relu(jnp.dot(wse1_ref[...], pooled.astype(cdt),
                               preferred_element_type=jnp.float32))   # (Cr,1)
            s2 = _hsigmoid(jnp.dot(wse2_ref[...], s1.astype(cdt),
                                   preferred_element_type=jnp.float32))
            h2 = h2 * s2
        h2 = act(h2)

        # ---- stage 3: 1x1 project (+folded BN3) [+ residual] -----------------
        y = jnp.dot(w3, h2.astype(cdt),
                    preferred_element_type=jnp.float32) + b3          # (Cout,Lout)
        if use_residual:
            y = y + xin.astype(jnp.float32)               # compact layout == flat HW
        o_ref[i] = y.astype(o_ref.dtype)                  # lane-dense, 128-mult store


def _pick_batch_block(N, bytes_per_image):
    """Largest divisor of N keeping >=2 grid steps (pipelining / v7x 2 TCs) and
    a small double-buffered block footprint."""
    budget = 6 * 1024 * 1024
    nb = 1
    for cand in range(1, N + 1):
        if N % cand:
            continue
        if N >= 2 and N // cand < 2:
            continue
        if cand * bytes_per_image * 2 > budget:
            continue
        nb = cand
    return nb


def bottleneck_forward(x, params, *, kernel_size, stride=1, dilation=1,
                       se=False, nl='RE', eps=1e-5,
                       compute_dtype=jnp.bfloat16, out_dtype=None,
                       batch_block=None):
    """Functional forward of the PyTorch Bottleneck module (eval-mode BN).

    x      : (N, Cin, H, W) NCHW, same as the PyTorch module.
    params : dict of PyTorch-layout weights (see _init_params).
    """
    assert stride in (1, 2)
    N, Cin, H, W = x.shape
    K = kernel_size
    d = dilation
    p = (K - 1) // 2 * d

    w1, w3 = params['w1'], params['w3']
    Cexp, Cout = w1.shape[0], w3.shape[0]

    Hp, Wp = H + 2 * p, W + 2 * p
    Ho1, Wo1 = Hp - (K - 1) * d, Wp - (K - 1) * d          # stride-1 output size
    Ho, Wo = (Ho1 - 1) // stride + 1, (Wo1 - 1) // stride + 1
    Lu = _round_up(H * W, 128)                             # unpadded flat width
    L = _round_up(Hp * Wp, 128)                            # padded flat width
    Lout = _round_up(Ho * Wo, 128)                         # compact output width

    use_residual = (stride == 1 and Cin == Cout)
    out_dtype = x.dtype if out_dtype is None else out_dtype
    cdt = compute_dtype

    # ---- fold BN (eval stats) into the conv weights (conv is linear) ---------
    def fold(w2d, bn):
        g, b, m, v = bn
        s = g / jnp.sqrt(v + eps)
        return w2d * s[:, None], (b - m * s)[:, None].astype(jnp.float32)

    w1f, b1 = fold(w1.reshape(Cexp, Cin), params['bn1'])
    wdwf, b2 = fold(params['wdw'].reshape(Cexp, K * K), params['bn2'])
    w3f, b3 = fold(w3.reshape(Cout, Cexp), params['bn3'])

    # ---- input: flatten HW onto lanes (contiguous reshape, no pad/cast pass) -
    xu = x.reshape(N, Cin, H * W)
    if Lu != H * W:
        # only when H*W is not a 128-multiple (one small lane-tail pad).
        xu = jnp.pad(xu, ((0, 0), (0, 0), (0, Lu - H * W)))

    # ---- exact 0/1 selection matrices (f32 -> pad/compact are exact gathers) -
    # P : unpadded flat (h*W + w) -> zero-padded flat ((h+p)*Wp + (w+p))
    hw = (jnp.arange(H)[:, None] + p) * Wp + (jnp.arange(W)[None, :] + p)
    src = jnp.concatenate([hw.reshape(-1).astype(jnp.int32),
                           jnp.full((Lu - H * W,), -1, jnp.int32)])
    pmat = (src[:, None] == jnp.arange(L, dtype=jnp.int32)[None, :]
            ).astype(jnp.float32)
    # S : padded stride-1 flat -> compact strided output columns (lane-dense)
    sel2d = (jnp.arange(Ho)[:, None] * stride * Wp
             + jnp.arange(Wo)[None, :] * stride)
    sel = jnp.concatenate([sel2d.reshape(-1).astype(jnp.int32),
                           jnp.full((Lout - Ho * Wo,), -1, jnp.int32)])
    smat = (jnp.arange(L, dtype=jnp.int32)[:, None] == sel[None, :]
            ).astype(jnp.float32)

    nb = batch_block if batch_block is not None else _pick_batch_block(
        N,
        Cin * Lu * x.dtype.itemsize
        + Cout * Lout * jnp.dtype(out_dtype).itemsize)
    assert N % nb == 0, (N, nb)

    kernel = functools.partial(
        _bottleneck_kernel, nb=nb, K=K, dilation=d, Wp=Wp, L=L,
        roll_mode=_roll_mode(), use_hswish=(nl == 'HS'), use_se=se,
        use_residual=use_residual)

    def _const(shape):
        return pl.BlockSpec(shape, lambda b: (0,) * len(shape))

    in_specs = [
        pl.BlockSpec((nb, Cin, Lu), lambda b: (b, 0, 0)),
        _const((Lu, L)),
        _const((L, Lout)),
        _const((Cexp, Cin)),
        _const((Cexp, 1)),
        _const((Cexp, K * K)),
        _const((Cexp, 1)),
        _const((Cout, Cexp)),
        _const((Cout, 1)),
    ]
    args = [xu, pmat, smat,
            w1f.astype(cdt), b1, wdwf, b2, w3f.astype(cdt), b3]
    if se:
        vvec = ((jnp.arange(Lout) < Ho * Wo).astype(jnp.float32)
                / float(Ho * Wo))[:, None]                  # masked mean vector
        wse1, wse2 = params['wse1'], params['wse2']
        in_specs += [_const((Lout, 1)), _const(wse1.shape), _const(wse2.shape)]
        args += [vvec, wse1.astype(cdt), wse2.astype(cdt)]

    o = pl.pallas_call(
        kernel,
        out_shape=jax.ShapeDtypeStruct((N, Cout, Lout), out_dtype),
        grid_spec=pltpu.PrefetchScalarGridSpec(
            num_scalar_prefetch=0,
            grid=(N // nb,),
            in_specs=in_specs,
            out_specs=pl.BlockSpec((nb, Cout, Lout), lambda b: (b, 0, 0)),
        ),
        compiler_params=pltpu.CompilerParams(
            dimension_semantics=("parallel",),
            # explicit scoped-VMEM limit: fits v7x (64 MiB physical), raises
            # v5e's 16 MiB default; v5e/v6e have 128 MiB physical headroom.
            vmem_limit_bytes=48 * 1024 * 1024,
        ),
    )(*args)

    # Compact layout -> (N, Cout, Ho, Wo); the slice is a no-op when Ho*Wo==Lout.
    return o[:, :, :Ho * Wo].reshape(N, Cout, Ho, Wo)


# ---------------------------- pure-JAX reference ------------------------------
def _reference(x, params, *, kernel_size, stride=1, dilation=1, se=False,
               nl='RE', eps=1e-5):
    K = kernel_size
    p = (K - 1) // 2 * dilation
    N, Cin, H, W = x.shape
    act = _hswish if nl == 'HS' else _relu
    hp = lax.Precision.HIGHEST

    def bn(y, stats):
        g, b, m, v = stats
        s = g / jnp.sqrt(v + eps)
        return y * s[None, :, None, None] + (b - m * s)[None, :, None, None]

    dn = ("NCHW", "OIHW", "NCHW")
    w1, wdw, w3 = params['w1'], params['wdw'], params['w3']
    Cexp, Cout = w1.shape[0], w3.shape[0]

    h = lax.conv_general_dilated(x, w1, (1, 1), [(0, 0), (0, 0)],
                                 dimension_numbers=dn, precision=hp)
    h = act(bn(h, params['bn1']))
    h = lax.conv_general_dilated(h, wdw, (stride, stride), [(p, p), (p, p)],
                                 rhs_dilation=(dilation, dilation),
                                 feature_group_count=Cexp,
                                 dimension_numbers=dn, precision=hp)
    h = bn(h, params['bn2'])
    if se:
        pooled = h.mean(axis=(2, 3))                                   # (N,Cexp)
        t = jnp.maximum(pooled @ params['wse1'].T, 0.0)
        t = jnp.clip(t @ params['wse2'].T + 3.0, 0.0, 6.0) / 6.0
        h = h * t[:, :, None, None]
    h = act(h)
    y = lax.conv_general_dilated(h, w3, (1, 1), [(0, 0), (0, 0)],
                                 dimension_numbers=dn, precision=hp)
    y = bn(y, params['bn3'])
    if stride == 1 and Cin == Cout:
        y = x + y
    return y


def _init_params(key, Cin, Cout, Cexp, K, se, reduction=4):
    ks = jax.random.split(key, 8)

    def bn_stats(k, C):
        k1, k2, k3, k4 = jax.random.split(k, 4)
        return (1.0 + 0.1 * jax.random.normal(k1, (C,), jnp.float32),
                0.1 * jax.random.normal(k2, (C,), jnp.float32),
                0.1 * jax.random.normal(k3, (C,), jnp.float32),
                jnp.abs(jax.random.normal(k4, (C,), jnp.float32)) + 0.5)

    p = {
        'w1': 0.3 * jax.random.normal(ks[0], (Cexp, Cin, 1, 1), jnp.float32),
        'bn1': bn_stats(ks[1], Cexp),
        'wdw': 0.3 * jax.random.normal(ks[2], (Cexp, 1, K, K), jnp.float32),
        'bn2': bn_stats(ks[3], Cexp),
        'w3': 0.3 * jax.random.normal(ks[4], (Cout, Cexp, 1, 1), jnp.float32),
        'bn3': bn_stats(ks[5], Cout),
    }
    if se:
        Cr = Cexp // reduction
        p['wse1'] = 0.3 * jax.random.normal(ks[6], (Cr, Cexp), jnp.float32)
        p['wse2'] = 0.3 * jax.random.normal(ks[7], (Cexp, Cr), jnp.float32)
    return p


if __name__ == "__main__":
    key = jax.random.PRNGKey(0)
    kx1, kp1, kx2, kp2 = jax.random.split(key, 4)

    # Config A: Hswish, stride 1, residual connection, no SE, f32 compute.
    N, Cin, H, W = 2, 8, 16, 16
    Cout, Cexp, K = 8, 16, 3
    x = jax.random.normal(kx1, (N, Cin, H, W), jnp.float32)
    params = _init_params(kp1, Cin, Cout, Cexp, K, se=False)
    out = bottleneck_forward(x, params, kernel_size=K, stride=1, se=False,
                             nl='HS', compute_dtype=jnp.float32)
    out = jax.block_until_ready(out)
    ref = _reference(x, params, kernel_size=K, stride=1, se=False, nl='HS')
    assert out.shape == ref.shape == (N, Cout, H, W)
    assert jnp.allclose(out, ref, atol=1e-2, rtol=1e-2), \
        float(jnp.max(jnp.abs(out - ref)))

    # Config B: ReLU, stride 2, SE block, bf16 MXU operands (f32 accumulation).
    N2, Cin2, H2, W2 = 2, 8, 16, 16
    Cout2, Cexp2, K2 = 16, 24, 3
    x2 = jax.random.normal(kx2, (N2, Cin2, H2, W2), jnp.float32)
    params2 = _init_params(kp2, Cin2, Cout2, Cexp2, K2, se=True)
    out2 = bottleneck_forward(x2, params2, kernel_size=K2, stride=2, se=True,
                              nl='RE', compute_dtype=jnp.bfloat16)
    out2 = jax.block_until_ready(out2)
    ref2 = _reference(x2, params2, kernel_size=K2, stride=2, se=True, nl='RE')
    assert out2.shape == ref2.shape == (N2, Cout2, 8, 8)
    assert jnp.allclose(out2, ref2, atol=6e-2, rtol=6e-2), \
        float(jnp.max(jnp.abs(out2 - ref2)))

    print("KERNEL_OK")
</pallas_src>

<mosaic_0001>
module attributes {stable_mosaic.version = 11 : i64} {
  func.func @k(%arg0: memref<8x384xf32, #tpu.memory_space<vmem>>, %arg1: memref<8x384xf32, #tpu.memory_space<vmem>>) attributes {dimension_semantics = [], scalar_prefetch = 0 : i64, scratch_operands = 0 : i64, tpu.core_type = #tpu.core_type<tc>} {
    %c0 = arith.constant 0 : index
    %c0_0 = arith.constant 0 : index
    %0 = vector.load %arg0[%c0, %c0_0] : memref<8x384xf32, #tpu.memory_space<vmem>>, vector<8x384xf32>
    %c203_i32 = arith.constant 203 : i32
    %1 = tpu.dynamic_rotate %0 by %c203_i32 dim 1 : vector<8x384xf32>, i32 -> vector<8x384xf32>
    %c0_1 = arith.constant 0 : index
    %c0_2 = arith.constant 0 : index
    %2 = vector.load %arg1[%c0_1, %c0_2] : memref<8x384xf32, #tpu.memory_space<vmem>>, vector<8x384xf32>
    tpu.vector_store %arg1[%c0_1, %c0_2], %1 {strides = array<i32>} : memref<8x384xf32, #tpu.memory_space<vmem>>, vector<8x384xf32>,
    return
  }
}

module attributes {stable_mosaic.version = 11 : i64} {
  func.func @_bottleneck_kernel(%arg0: i32, %arg1: memref<1x8x256xf32, #tpu.memory_space<vmem>>, %arg2: memref<256x384xf32, #tpu.memory_space<vmem>>, %arg3: memref<384x256xf32, #tpu.memory_space<vmem>>, %arg4: memref<16x8xf32, #tpu.memory_space<vmem>>, %arg5: memref<16x1xf32, #tpu.memory_space<vmem>>, %arg6: memref<16x9xf32, #tpu.memory_space<vmem>>, %arg7: memref<16x1xf32, #tpu.memory_space<vmem>>, %arg8: memref<8x16xf32, #tpu.memory_space<vmem>>, %arg9: memref<8x1xf32, #tpu.memory_space<vmem>>, %arg10: memref<1x8x256xf32, #tpu.memory_space<vmem>>) attributes {dimension_semantics = [#tpu.dimension_semantics<parallel>], iteration_bounds = array<i64: 2>, scalar_prefetch = 0 : i64, scratch_operands = 0 : i64, tpu.core_type = #tpu.core_type<tc>, window_params = [{transform_indices = @transform_0, window_bounds = array<i64: 1, 8, 256>}, {pipeline_mode = #tpu.pipeline_mode<synchronous>, transform_indices = @transform_1, window_bounds = array<i64: 256, 384>}, {pipeline_mode = #tpu.pipeline_mode<synchronous>, transform_indices = @transform_2, window_bounds = array<i64: 384, 256>}, {pipeline_mode = #tpu.pipeline_mode<synchronous>, transform_indices = @transform_3, window_bounds = array<i64: 16, 8>}, {pipeline_mode = #tpu.pipeline_mode<synchronous>, transform_indices = @transform_4, window_bounds = array<i64: 16, 1>}, {pipeline_mode = #tpu.pipeline_mode<synchronous>, transform_indices = @transform_5, window_bounds = array<i64: 16, 9>}, {pipeline_mode = #tpu.pipeline_mode<synchronous>, transform_indices = @transform_6, window_bounds = array<i64: 16, 1>}, {pipeline_mode = #tpu.pipeline_mode<synchronous>, transform_indices = @transform_7, window_bounds = array<i64: 8, 16>}, {pipeline_mode = #tpu.pipeline_mode<synchronous>, transform_indices = @transform_8, window_bounds = array<i64: 8, 1>}, {transform_indices = @transform_9, window_bounds = array<i64: 1, 8, 256>}]} {
    %c0 = arith.constant 0 : index
    %c0_0 = arith.constant 0 : index
    %0 = vector.load %arg4[%c0, %c0_0] : memref<16x8xf32, #tpu.memory_space<vmem>>, vector<16x8xf32>
    %c0_1 = arith.constant 0 : index
    %c0_2 = arith.constant 0 : index
    %1 = vector.load %arg5[%c0_1, %c0_2] : memref<16x1xf32, #tpu.memory_space<vmem>>, vector<16x1xf32>
    %c0_3 = arith.constant 0 : index
    %c0_4 = arith.constant 0 : index
    %2 = vector.load %arg2[%c0_3, %c0_4] : memref<256x384xf32, #tpu.memory_space<vmem>>, vector<256x384xf32>
    %c0_5 = arith.constant 0 : index
    %c0_6 = arith.constant 0 : index
    %3 = vector.load %arg3[%c0_5, %c0_6] : memref<384x256xf32, #tpu.memory_space<vmem>>, vector<384x256xf32>
    %c0_7 = arith.constant 0 : index
    %c0_8 = arith.constant 0 : index
    %4 = vector.load %arg6[%c0_7, %c0_8] : memref<16x9xf32, #tpu.memory_space<vmem>>, vector<16x9xf32>
    %c0_9 = arith.constant 0 : index
    %c0_10 = arith.constant 0 : index
    %5 = vector.load %arg7[%c0_9, %c0_10] : memref<16x1xf32, #tpu.memory_space<vmem>>, vector<16x1xf32>
    %c0_11 = arith.constant 0 : index
    %c0_12 = arith.constant 0 : index
    %6 = vector.load %arg8[%c0_11, %c0_12] : memref<8x16xf32, #tpu.memory_space<vmem>>, vector<8x16xf32>
    %c0_13 = arith.constant 0 : index
    %c0_14 = arith.constant 0 : index
    %7 = vector.load %arg9[%c0_13, %c0_14] : memref<8x1xf32, #tpu.memory_space<vmem>>, vector<8x1xf32>
    %c0_15 = arith.constant 0 : index
    %c0_16 = arith.constant 0 : index
    %c0_17 = arith.constant 0 : index
    %8 = vector.load %arg1[%c0_15, %c0_16, %c0_17] : memref<1x8x256xf32, #tpu.memory_space<vmem>>, vector<1x8x256xf32>
    %9 = vector.shape_cast %8 : vector<1x8x256xf32> to vector<8x256xf32>
    %cst = arith.constant dense<0.000000e+00> : vector<16x256xf32>
    %10 = tpu.matmul %0, %9, %cst {dimension_numbers = #tpu.dot_dimension_numbers<[1], [0], [0], [1], [0, 0, 1, 1], [], []>} : vector<16x8xf32>, vector<8x256xf32>, vector<16x256xf32> -> vector<16x256xf32>
    %11 = vector.broadcast %1 : vector<16x1xf32> to vector<16x256xf32>
    %12 = arith.addf %10, %11 : vector<16x256xf32>
    %cst_18 = arith.constant 3.000000e+00 : f32
    %13 = vector.broadcast %cst_18 : f32 to vector<16x256xf32>
    %14 = arith.addf %12, %13 : vector<16x256xf32>
    %cst_19 = arith.constant 0.000000e+00 : f32
    %cst_20 = arith.constant 6.000000e+00 : f32
    %15 = vector.broadcast %cst_19 : f32 to vector<16x256xf32>
    %16 = arith.maximumf %15, %14 : vector<16x256xf32>
    %17 = vector.broadcast %cst_20 : f32 to vector<16x256xf32>
    %18 = arith.minimumf %17, %16 : vector<16x256xf32>
    %19 = arith.mulf %12, %18 : vector<16x256xf32>
    %cst_21 = arith.constant 0.166666672 : f32
    %20 = vector.broadcast %cst_21 : f32 to vector<16x256xf32>
    %21 = arith.mulf %19, %20 : vector<16x256xf32>
    %cst_22 = arith.constant dense<0.000000e+00> : vector<16x384xf32>
    %22 = tpu.matmul %21, %2, %cst_22 {dimension_numbers = #tpu.dot_dimension_numbers<[1], [0], [0], [1], [0, 0, 1, 1], [], []>} : vector<16x256xf32>, vector<256x384xf32>, vector<16x384xf32> -> vector<16x384xf32>
    %23 = vector.extract_strided_slice %4 {offsets = [0, 0], sizes = [16, 1], strides = [1, 1]} : vector<16x9xf32> to vector<16x1xf32>
    %24 = vector.broadcast %23 : vector<16x1xf32> to vector<16x384xf32>
    %25 = arith.mulf %22, %24 : vector<16x384xf32>
    %26 = vector.extract_strided_slice %22 {offsets = [0, 1], sizes = [16, 383], strides = [1, 1]} : vector<16x384xf32> to vector<16x383xf32>
    %27 = vector.extract_strided_slice %22 {offsets = [0, 0], sizes = [16, 1], strides = [1, 1]} : vector<16x384xf32> to vector<16x1xf32>
    %28 = tpu.concatenate %26, %27 in 1 : vector<16x383xf32>, vector<16x1xf32> -> vector<16x384xf32>
    %29 = vector.extract_strided_slice %4 {offsets = [0, 1], sizes = [16, 1], strides = [1, 1]} : vector<16x9xf32> to vector<16x1xf32>
    %30 = vector.broadcast %29 : vector<16x1xf32> to vector<16x384xf32>
    %31 = arith.mulf %28, %30 : vector<16x384xf32>
    %32 = arith.addf %25, %31 : vector<16x384xf32>
    %33 = vector.extract_strided_slice %22 {offsets = [0, 2], sizes = [16, 382], strides = [1, 1]} : vector<16x384xf32> to vector<16x382xf32>
    %34 = vector.extract_strided_slice %22 {offsets = [0, 0], sizes = [16, 2], strides = [1, 1]} : vector<16x384xf32> to vector<16x2xf32>
    %35 = tpu.concatenate %33, %34 in 1 : vector<16x382xf32>, vector<16x2xf32> -> vector<16x384xf32>
    %36 = vector.extract_strided_slice %4 {offsets = [0, 2], sizes = [16, 1], strides = [1, 1]} : vector<16x9xf32> to vector<16x1xf32>
    %37 = vector.broadcast %36 : vector<16x1xf32> to vector<16x384xf32>
    %38 = arith.mulf %35, %37 : vector<16x384xf32>
    %39 = arith.addf %32, %38 : vector<16x384xf32>
    %40 = vector.extract_strided_slice %22 {offsets = [0, 18], sizes = [16, 366], strides = [1, 1]} : vector<16x384xf32> to vector<16x366xf32>
    %41 = vector.extract_strided_slice %22 {offsets = [0, 0], sizes = [16, 18], strides = [1, 1]} : vector<16x384xf32> to vector<16x18xf32>
    %42 = tpu.concatenate %40, %41 in 1 : vector<16x366xf32>, vector<16x18xf32> -> vector<16x384xf32>
    %43 = vector.extract_strided_slice %4 {offsets = [0, 3], sizes = [16, 1], strides = [1, 1]} : vector<16x9xf32> to vector<16x1xf32>
    %44 = vector.broadcast %43 : vector<16x1xf32> to vector<16x384xf32>
    %45 = arith.mulf %42, %44 : vector<16x384xf32>
    %46 = arith.addf %39, %45 : vector<16x384xf32>
    %47 = vector.extract_strided_slice %22 {offsets = [0, 19], sizes = [16, 365], strides = [1, 1]} : vector<16x384xf32> to vector<16x365xf32>
    %48 = vector.extract_strided_slice %22 {offsets = [0, 0], sizes = [16, 19], strides = [1, 1]} : vector<16x384xf32> to vector<16x19xf32>
    %49 = tpu.concatenate %47, %48 in 1 : vector<16x365xf32>, vector<16x19xf32> -> vector<16x384xf32>
    %50 = vector.extract_strided_slice %4 {offsets = [0, 4], sizes = [16, 1], strides = [1, 1]} : vector<16x9xf32> to vector<16x1xf32>
    %51 = vector.broadcast %50 : vector<16x1xf32> to vector<16x384xf32>
    %52 = arith.mulf %49, %51 : vector<16x384xf32>
    %53 = arith.addf %46, %52 : vector<16x384xf32>
    %54 = vector.extract_strided_slice %22 {offsets = [0, 20], sizes = [16, 364], strides = [1, 1]} : vector<16x384xf32> to vector<16x364xf32>
    %55 = vector.extract_strided_slice %22 {offsets = [0, 0], sizes = [16, 20], strides = [1, 1]} : vector<16x384xf32> to vector<16x20xf32>
    %56 = tpu.concatenate %54, %55 in 1 : vector<16x364xf32>, vector<16x20xf32> -> vector<16x384xf32>
    %57 = vector.extract_strided_slice %4 {offsets = [0, 5], sizes = [16, 1], strides = [1, 1]} : vector<16x9xf32> to vector<16x1xf32>
    %58 = vector.broadcast %57 : vector<16x1xf32> to vector<16x384xf32>
    %59 = arith.mulf %56, %58 : vector<16x384xf32>
    %60 = arith.addf %53, %59 : vector<16x384xf32>
    %61 = vector.extract_strided_slice %22 {offsets = [0, 36], sizes = [16, 348], strides = [1, 1]} : vector<16x384xf32> to vector<16x348xf32>
    %62 = vector.extract_strided_slice %22 {offsets = [0, 0], sizes = [16, 36], strides = [1, 1]} : vector<16x384xf32> to vector<16x36xf32>
    %63 = tpu.concatenate %61, %62 in 1 : vector<16x348xf32>, vector<16x36xf32> -> vector<16x384xf32>
    %64 = vector.extract_strided_slice %4 {offsets = [0, 6], sizes = [16, 1], strides = [1, 1]} : vector<16x9xf32> to vector<16x1xf32>
    %65 = vector.broadcast %64 : vector<16x1xf32> to vector<16x384xf32>
    %66 = arith.mulf %63, %65 : vector<16x384xf32>
    %67 = arith.addf %60, %66 : vector<16x384xf32>
    %68 = vector.extract_strided_slice %22 {offsets = [0, 37], sizes = [16, 347], strides = [1, 1]} : vector<16x384xf32> to vector<16x347xf32>
    %69 = vector.extract_strided_slice %22 {offsets = [0, 0], sizes = [16, 37], strides = [1, 1]} : vector<16x384xf32> to vector<16x37xf32>
    %70 = tpu.concatenate %68, %69 in 1 : vector<16x347xf32>, vector<16x37xf32> -> vector<16x384xf32>
    %71 = vector.extract_strided_slice %4 {offsets = [0, 7], sizes = [16, 1], strides = [1, 1]} : vector<16x9xf32> to vector<16x1xf32>
    %72 = vector.broadcast %71 : vector<16x1xf32> to vector<16x384xf32>
    %73 = arith.mulf %70, %72 : vector<16x384xf32>
    %74 = arith.addf %67, %73 : vector<16x384xf32>
    %75 = vector.extract_strided_slice %22 {offsets = [0, 38], sizes = [16, 346], strides = [1, 1]} : vector<16x384xf32> to vector<16x346xf32>
    %76 = vector.extract_strided_slice %22 {offsets = [0, 0], sizes = [16, 38], strides = [1, 1]} : vector<16x384xf32> to vector<16x38xf32>
    %77 = tpu.concatenate %75, %76 in 1 : vector<16x346xf32>, vector<16x38xf32> -> vector<16x384xf32>
    %78 = vector.extract_strided_slice %4 {offsets = [0, 8], sizes = [16, 1], strides = [1, 1]} : vector<16x9xf32> to vector<16x1xf32>
    %79 = vector.broadcast %78 : vector<16x1xf32> to vector<16x384xf32>
    %80 = arith.mulf %77, %79 : vector<16x384xf32>
    %81 = arith.addf %74, %80 : vector<16x384xf32>
    %cst_23 = arith.constant dense<0.000000e+00> : vector<16x256xf32>
    %82 = tpu.matmul %81, %3, %cst_23 {dimension_numbers = #tpu.dot_dimension_numbers<[1], [0], [0], [1], [0, 0, 1, 1], [], []>} : vector<16x384xf32>, vector<384x256xf32>, vector<16x256xf32> -> vector<16x256xf32>
    %83 = vector.broadcast %5 : vector<16x1xf32> to vector<16x256xf32>
    %84 = arith.addf %82, %83 : vector<16x256xf32>
    %cst_24 = arith.constant 3.000000e+00 : f32
    %85 = vector.broadcast %cst_24 : f32 to vector<16x256xf32>
    %86 = arith.addf %84, %85 : vector<16x256xf32>
    %cst_25 = arith.constant 0.000000e+00 : f32
    %cst_26 = arith.constant 6.000000e+00 : f32
    %87 = vector.broadcast %cst_25 : f32 to vector<16x256xf32>
    %88 = arith.maximumf %87, %86 : vector<16x256xf32>
    %89 = vector.broadcast %cst_26 : f32 to vector<16x256xf32>
    %90 = arith.minimumf %89, %88 : vector<16x256xf32>
    %91 = arith.mulf %84, %90 : vector<16x256xf32>
    %cst_27 = arith.constant 0.166666672 : f32
    %92 = vector.broadcast %cst_27 : f32 to vector<16x256xf32>
    %93 = arith.mulf %91, %92 : vector<16x256xf32>
    %cst_28 = arith.constant dense<0.000000e+00> : vector<8x256xf32>
    %94 = tpu.matmul %6, %93, %cst_28 {dimension_numbers = #tpu.dot_dimension_numbers<[1], [0], [0], [1], [0, 0, 1, 1], [], []>} : vector<8x16xf32>, vector<16x256xf32>, vector<8x256xf32> -> vector<8x256xf32>
    %95 = vector.broadcast %7 : vector<8x1xf32> to vector<8x256xf32>
    %96 = arith.addf %94, %95 : vector<8x256xf32>
    %97 = arith.addf %96, %9 : vector<8x256xf32>
    %c0_29 = arith.constant 0 : index
    %c0_30 = arith.constant 0 : index
    %c0_31 = arith.constant 0 : index
    %98 = vector.load %arg10[%c0_29, %c0_30, %c0_31] : memref<1x8x256xf32, #tpu.memory_space<vmem>>, vector<1x8x256xf32>
    %99 = vector.shape_cast %98 : vector<1x8x256xf32> to vector<8x256xf32>
    %100 = vector.shape_cast %97 : vector<8x256xf32> to vector<1x8x256xf32>
    tpu.vector_store %arg10[%c0_29, %c0_30, %c0_31], %100 {strides = array<i32>} : memref<1x8x256xf32, #tpu.memory_space<vmem>>, vector<1x8x256xf32>,
    return
  }
  func.func @transform_0(%arg0: i32) -> (i32, i32, i32) {
    %c0_i32 = arith.constant 0 : i32
    %c0_i32_0 = arith.constant 0 : i32
    %c0_i32_1 = arith.constant 0 : i32
    return %arg0, %c0_i32, %c0_i32_0 : i32, i32, i32
  }
  func.func @transform_1(%arg0: i32) -> (i32, i32) {
    %c0_i32 = arith.constant 0 : i32
    %c0_i32_0 = arith.constant 0 : i32
    %c0_i32_1 = arith.constant 0 : i32
    return %c0_i32, %c0_i32_0 : i32, i32
  }
  func.func @transform_2(%arg0: i32) -> (i32, i32) {
    %c0_i32 = arith.constant 0 : i32
    %c0_i32_0 = arith.constant 0 : i32
    %c0_i32_1 = arith.constant 0 : i32
    return %c0_i32, %c0_i32_0 : i32, i32
  }
  func.func @transform_3(%arg0: i32) -> (i32, i32) {
    %c0_i32 = arith.constant 0 : i32
    %c0_i32_0 = arith.constant 0 : i32
    %c0_i32_1 = arith.constant 0 : i32
    return %c0_i32, %c0_i32_0 : i32, i32
  }
  func.func @transform_4(%arg0: i32) -> (i32, i32) {
    %c0_i32 = arith.constant 0 : i32
    %c0_i32_0 = arith.constant 0 : i32
    %c0_i32_1 = arith.constant 0 : i32
    return %c0_i32, %c0_i32_0 : i32, i32
  }
  func.func @transform_5(%arg0: i32) -> (i32, i32) {
    %c0_i32 = arith.constant 0 : i32
    %c0_i32_0 = arith.constant 0 : i32
    %c0_i32_1 = arith.constant 0 : i32
    return %c0_i32, %c0_i32_0 : i32, i32
  }
  func.func @transform_6(%arg0: i32) -> (i32, i32) {
    %c0_i32 = arith.constant 0 : i32
    %c0_i32_0 = arith.constant 0 : i32
    %c0_i32_1 = arith.constant 0 : i32
    return %c0_i32, %c0_i32_0 : i32, i32
  }
  func.func @transform_7(%arg0: i32) -> (i32, i32) {
    %c0_i32 = arith.constant 0 : i32
    %c0_i32_0 = arith.constant 0 : i32
    %c0_i32_1 = arith.constant 0 : i32
    return %c0_i32, %c0_i32_0 : i32, i32
  }
  func.func @transform_8(%arg0: i32) -> (i32, i32) {
    %c0_i32 = arith.constant 0 : i32
    %c0_i32_0 = arith.constant 0 : i32
    %c0_i32_1 = arith.constant 0 : i32
    return %c0_i32, %c0_i32_0 : i32, i32
  }
  func.func @transform_9(%arg0: i32) -> (i32, i32, i32) {
    %c0_i32 = arith.constant 0 : i32
    %c0_i32_0 = arith.constant 0 : i32
    %c0_i32_1 = arith.constant 0 : i32
    return %arg0, %c0_i32, %c0_i32_0 : i32, i32, i32
  }
}

</mosaic_0001>

<llo_original>
// kernel: tpu_custom_call.1
$region0: #{tpu_custom_call.1}
  #allocation0 [shape = 'u32[]', space=smem, size = 0x4, offset = 0x4, fixed_abs, tag = 'smem constant byte address 0x4 - core index']
  #allocation1 [shape = 'u32[144,128]{1,0:T(1,128)}', space=vmem, size = 0x12000, scoped, tag = 'internal scratch']
  %s0 = inlined_call_operand.hbm [shape: f32[8,384], index: 0, kind: input, shape index: {}]
  %s1 = inlined_call_operand.hbm [shape: f32[8,384], index: 1, kind: output, shape index: {}]
  %s2 = sld [smem:[#allocation0]]
  $region18: #{tpu_custom_call.1} parent=0
    _
  %s4 = ssub.s32 1, %s2
  %s5 = scalar_select 0, %s4, %s2
  $region1: #{tpu_custom_call.1} parent=0
    #allocation2 [shape = 'u8[12288]{0}', space=vmem, size = 0x3000, scoped, tag = 'input window, operand 0, single buffered']
    #allocation3 [shape = 's32[1]{0}', space=sflag, size = 0x4, scoped, tag = 'scoped memory for tpu_custom_call.1']
    #allocation4 [shape = 's32[1]{0}', space=sflag, size = 0x4, scoped, tag = 'scoped memory for tpu_custom_call.1']
    #allocation5 [shape = 'u8[12288]{0}', space=vmem, size = 0x3000, scoped, tag = 'output window, operand 0, single buffered']
    %6 = vsyncpa [#allocation3], 0
    %7 = vsyncpa [#allocation4], 0
    // Predicated region
    $region2: #{tpu_custom_call.1} parent=1 // pred_check
      _
    $region3: #{tpu_custom_call.1} parent=1 // pred_check_branch
      %9 = sbr.rel (0) target = $region5
    $region4: #{tpu_custom_call.1} parent=1 // pred_region
      %s11 = ssub.s32 384, 384
      %12 = vsyncadd [#allocation3], %s11
      %s14 = sshll.u32 [#allocation2], 4
      %s15 = int_to_ptr.vmem [resolvable:$true] %s14
      %17 = dma.hbm_to_vmem [thread:$0]  %s0, 384, %s15, [#allocation3]
    $region5: #{tpu_custom_call.1} parent=1 // pred_fallthru
      _
    // Predicated region
    $region6: #{tpu_custom_call.1} parent=1 // pred_check
      _
    $region7: #{tpu_custom_call.1} parent=1 // pred_check_branch
      %19 = sbr.rel (0) target = $region9
    $region8: #{tpu_custom_call.1} parent=1 // pred_region
      %20 = dma.done [#allocation3], 384
    $region9: #{tpu_custom_call.1} parent=1 // pred_fallthru
      _
    %v21 = vld [vmem:[#allocation2] sm:$0xff]
    %v22 = vld [vmem:[#allocation2 + $0x8] sm:$0xff]
    %v23 = vld [vmem:[#allocation2 + $0x10] sm:$0xff]
    %24 = vrot.lane.b32.xlu0 %v21, 75
    %v25 = vpop.permute.xlu0 %24
    %26 = vrot.lane.b32.xlu0 %v22, 75
    %v27 = vpop.permute.xlu0 %26
    %28 = vrot.lane.b32.xlu0 %v23, 75
    %v29 = vpop.permute.xlu0 %28
    %v30 = vlaneseq
    %v31 = vand.u32 %v30, 127
    %vm32 = vcmp.lt.s32.totalorder %v31, 75
    %v33 = vsel %vm32, %v27, %v29
    %v34 = vsel %vm32, %v25, %v27
    %v35 = vsel %vm32, %v29, %v25
    %36 = vst [vmem:[#allocation5] sm:$0xff] %v33
    %37 = vst [vmem:[#allocation5 + $0x8] sm:$0xff] %v35
    %38 = vst [vmem:[#allocation5 + $0x10] sm:$0xff] %v34
    // Predicated region
    $region10: #{tpu_custom_call.1} parent=1 // pred_check
      _
    $region11: #{tpu_custom_call.1} parent=1 // pred_check_branch
      %40 = sbr.rel (0) target = $region13
    $region12: #{tpu_custom_call.1} parent=1 // pred_region
      %s42 = ssub.s32 384, 384
      %43 = vsyncadd [#allocation4], %s42
      %s45 = sshll.u32 [#allocation5], 4
      %s46 = int_to_ptr.vmem [resolvable:$true] %s45
      %48 = dma.vmem_to_hbm [thread:$0]  %s46, 384, %s1, [#allocation4]
    $region13: #{tpu_custom_call.1} parent=1 // pred_fallthru
      _
    // Predicated region
    $region14: #{tpu_custom_call.1} parent=1 // pred_check
      _
    $region15: #{tpu_custom_call.1} parent=1 // pred_check_branch
      %50 = sbr.rel (0) target = $region17
    $region16: #{tpu_custom_call.1} parent=1 // pred_region
      %51 = dma.done [#allocation4], 384
    $region17: #{tpu_custom_call.1} parent=1 // pred_fallthru
      _
    %52 = vsyncpa [#allocation3], 1
    %53 = vsyncpa [#allocation4], 1

// kernel: tpu_custom_call.1
$region0: #{tpu_custom_call.1}
  #allocation0 [shape = 'u32[]', space=smem, size = 0x4, offset = 0x4, fixed_abs, tag = 'smem constant byte address 0x4 - core index']
  #allocation1 [shape = 'u32[144,128]{1,0:T(1,128)}', space=vmem, size = 0x12000, scoped, tag = 'internal scratch']
  %s0 = inlined_call_operand.vmem [shape: f32[2,8,256], index: 0, kind: input, shape index: {}]
  %s1 = inlined_call_operand.hbm [shape: f32[256,384], index: 1, kind: input, shape index: {}]
  %s2 = inlined_call_operand.hbm [shape: f32[384,256], index: 2, kind: input, shape index: {}]
  %s3 = inlined_call_operand.vmem [shape: f32[16,8], index: 3, kind: input, shape index: {}]
  %s4 = inlined_call_operand.vmem [shape: f32[16,1], index: 4, kind: input, shape index: {}]
  %s5 = inlined_call_operand.vmem [shape: f32[16,9], index: 5, kind: input, shape index: {}]
  %s6 = inlined_call_operand.vmem [shape: f32[16,1], index: 6, kind: input, shape index: {}]
  %s7 = inlined_call_operand.vmem [shape: f32[8,16], index: 7, kind: input, shape index: {}]
  %s8 = inlined_call_operand.vmem [shape: f32[8,1], index: 8, kind: input, shape index: {}]
  %s9 = inlined_call_operand.hbm [shape: f32[2,8,256], index: 9, kind: output, shape index: {}]
  %s10 = sld [smem:[#allocation0]]
  $region77: #{tpu_custom_call.1} parent=0
    _
  %s12 = ssub.s32 1, %s10
  %s13 = scalar_select 0, %s12, %s10
  $region1: #{tpu_custom_call.1} parent=0
    #allocation2 [shape = 'u8[393216]{0}', space=vmem, size = 0x60000, scoped, tag = 'input window, operand 1, single buffered']
    #allocation3 [shape = 's32[2]{0}', space=sflag, size = 0x8, scoped, tag = 'scoped memory for tpu_custom_call.1']
    #allocation4 [shape = 's32[2]{0}', space=sflag, size = 0x8, scoped, tag = 'scoped memory for tpu_custom_call.1']
    #allocation5 [shape = 'u8[393216]{0}', space=vmem, size = 0x60000, scoped, tag = 'input window, operand 2, single buffered']
    #allocation6 [shape = 's32[1]{0}', space=sflag, size = 0x4, scoped, tag = 'scoped memory for tpu_custom_call.1']
    #allocation7 [shape = 'u8[16384]{0}', space=vmem, size = 0x4000, scoped, tag = 'output window, operand 0']
    %14 = vsyncpa [#allocation3], 0
    %15 = vsyncpa [#allocation6], 0
    %16 = vsyncpa [#allocation4], 0
    %s17 = scalar_lea.sflag [#allocation4], 1
    %18 = vsyncpa %s17, 0
    loop: start=0, step=1, limit=4
    $region2: #{tpu_custom_call.1} parent=1 // loop_pre_header
      _
    $region3: #{tpu_custom_call.1} parent=1 // loop_header
      %s20 = sphi 0, %s24
      %p21 = scmp.ge.s32.totalorder %s20, 4
      %s30 = sphi 0, %s32
      %s33 = sphi 0, %s30
      %s34 = sphi 0, %s33
      %s50 = sphi 0, %s34
      %s54 = sphi 0, %s54
      %s56 = sphi 0, %s54
      %s57 = sphi 0, %s56
      %s71 = sphi 0, %s57
      %s75 = sphi 0, %s75
      %s77 = sphi 0, %s75
      %s78 = sphi 0, %s77
      %s92 = sphi 0, %s78
      %s96 = sphi 0, %s96
      %s98 = sphi 0, %s96
      %s99 = sphi 0, %s98
      %s113 = sphi 0, %s99
      %s117 = sphi 0, %s117
      %s119 = sphi 0, %s117
      %s120 = sphi 0, %s119
      %s134 = sphi 0, %s120
      %s138 = sphi 0, %s138
      %s140 = sphi 0, %s138
      %s141 = sphi 0, %s140
      %s155 = sphi 0, %s141
      %s159 = sphi 0, %s159
      %s161 = sphi 0, %s159
      %s162 = sphi 0, %s161
      %s176 = sphi 0, %s162
      %s180 = sphi 0, %s180
      %s182 = sphi 0, %s180
      %s183 = sphi 0, %s182
      %s197 = sphi 0, %s183
      %s201 = sphi 0, %s201
      %s203 = sphi 0, %s201
      %s204 = sphi 0, %s203
      %s218 = sphi 0, %s204
      %s224 = sphi 0, %s226
      %s227 = sphi 0, %s224
      %s228 = sphi 0, %s227
      %s244 = sphi 0, %s228
    $region4: #{tpu_custom_call.1} parent=1 // loop_header_branch
      %23 = sbr.rel (%p21) target = $region8
    $region5: #{tpu_custom_call.1} parent=1 // loop_body
      %s25 = ssub.s32 %s20, 1
      %s26 = ssub.s32 %s20, 2
      %s27 = sadd.s32 %s20, 1
      %s28 = ssub.s32 %s20, %s27
      %p29 = scmp.eq.s32.totalorder %s28, 0
      %s31 = sadd.s32 %s30, 1
      %s32 = scalar_select %p29, %s30, %s31
      %p35 = pneg %p29
      %p36 = scmp.eq.s32.totalorder %s20, 1
      %p37 = por %p35, %p36
      %p38 = scmp.ne.s32.totalorder %s30, %s33
      %p39 = scmp.eq.s32.totalorder %s20, 0
      %p40 = por %p38, %p39
      %p41 = scmp.ne.s32.totalorder %s30, %s33
      %p42 = scmp.eq.s32.totalorder %s25, 1
      %p43 = por %p41, %p42
      %p44 = scmp.ne.s32.totalorder %s33, %s34
      %p45 = scmp.eq.s32.totalorder %s25, 0
      %p46 = por %p44, %p45
      %p47 = scmp.ne.s32.totalorder %s33, %s34
      %p48 = scmp.eq.s32.totalorder %s26, 1
      %p49 = por %p47, %p48
      %p51 = scmp.ne.s32.totalorder %s34, %s50
      %p52 = scmp.eq.s32.totalorder %s26, 0
      %p53 = por %p51, %p52
      %s55 = sadd.s32 %s54, 1
      %p58 = scmp.eq.s32.totalorder %s20, 1
      %p59 = scmp.ne.s32.totalorder %s54, %s56
      %p60 = scmp.eq.s32.totalorder %s20, 0
      %p61 = por %p59, %p60
      %p62 = scmp.ne.s32.totalorder %s54, %s56
      %p63 = scmp.eq.s32.totalorder %s25, 1
      %p64 = por %p62, %p63
      %p65 = scmp.ne.s32.totalorder %s56, %s57
      %p66 = scmp.eq.s32.totalorder %s25, 0
      %p67 = por %p65, %p66
      %p68 = scmp.ne.s32.totalorder %s56, %s57
      %p69 = scmp.eq.s32.totalorder %s26, 1
      %p70 = por %p68, %p69
      %p72 = scmp.ne.s32.totalorder %s57, %s71
      %p73 = scmp.eq.s32.totalorder %s26, 0
      %p74 = por %p72, %p73
      %s76 = sadd.s32 %s75, 1
      %p79 = scmp.eq.s32.totalorder %s20, 1
      %p80 = scmp.ne.s32.totalorder %s75, %s77
      %p81 = scmp.eq.s32.totalorder %s20, 0
      %p82 = por %p80, %p81
      %p83 = scmp.ne.s32.totalorder %s75, %s77
      %p84 = scmp.eq.s32.totalorder %s25, 1
      %p85 = por %p83, %p84
      %p86 = scmp.ne.s32.totalorder %s77, %s78
      %p87 = scmp.eq.s32.totalorder %s25, 0
      %p88 = por %p86, %p87
      %p89 = scmp.ne.s32.totalorder %s77, %s78
      %p90 = scmp.eq.s32.totalorder %s26, 1
      %p91 = por %p89, %p90
      %p93 = scmp.ne.s32.totalorder %s78, %s92
      %p94 = scmp.eq.s32.totalorder %s26, 0
      %p95 = por %p93, %p94
      %s97 = sadd.s32 %s96, 1
      %p100 = scmp.eq.s32.totalorder %s20, 1
      %p101 = scmp.ne.s32.totalorder %s96, %s98
      %p102 = scmp.eq.s32.totalorder %s20, 0
      %p103 = por %p101, %p102
      %p104 = scmp.ne.s32.totalorder %s96, %s98
      %p105 = scmp.eq.s32.totalorder %s25, 1
      %p106 = por %p104, %p105
      %p107 = scmp.ne.s32.totalorder %s98, %s99
      %p108 = scmp.eq.s32.totalorder %s25, 0
      %p109 = por %p107, %p108
      %p110 = scmp.ne.s32.totalorder %s98, %s99
      %p111 = scmp.eq.s32.totalorder %s26, 1
      %p112 = por %p110, %p111
      %p114 = scmp.ne.s32.totalorder %s99, %s113
      %p115 = scmp.eq.s32.totalorder %s26, 0
      %p116 = por %p114, %p115
      %s118 = sadd.s32 %s117, 1
      %p121 = scmp.eq.s32.totalorder %s20, 1
      %p122 = scmp.ne.s32.totalorder %s117, %s119
      %p123 = scmp.eq.s32.totalorder %s20, 0
      %p124 = por %p122, %p123
      %p125 = scmp.ne.s32.totalorder %s117, %s119
      %p126 = scmp.eq.s32.totalorder %s25, 1
      %p127 = por %p125, %p126
      %p128 = scmp.ne.s32.totalorder %s119, %s120
      %p129 = scmp.eq.s32.totalorder %s25, 0
      %p130 = por %p128, %p129
      %p131 = scmp.ne.s32.totalorder %s119, %s120
      %p132 = scmp.eq.s32.totalorder %s26, 1
      %p133 = por %p131, %p132
      %p135 = scmp.ne.s32.totalorder %s120, %s134
      %p136 = scmp.eq.s32.totalorder %s26, 0
      %p137 = por %p135, %p136
      %s139 = sadd.s32 %s138, 1
      %p142 = scmp.eq.s32.totalorder %s20, 1
      %p143 = scmp.ne.s32.totalorder %s138, %s140
      %p144 = scmp.eq.s32.totalorder %s20, 0
      %p145 = por %p143, %p144
      %p146 = scmp.ne.s32.totalorder %s138, %s140
      %p147 = scmp.eq.s32.totalorder %s25, 1
      %p148 = por %p146, %p147
      %p149 = scmp.ne.s32.totalorder %s140, %s141
      %p150 = scmp.eq.s32.totalorder %s25, 0
      %p151 = por %p149, %p150
      %p152 = scmp.ne.s32.totalorder %s140, %s141
      %p153 = scmp.eq.s32.totalorder %s26, 1
      %p154 = por %p152, %p153
      %p156 = scmp.ne.s32.totalorder %s141, %s155
      %p157 = scmp.eq.s32.totalorder %s26, 0
      %p158 = por %p156, %p157
      %s160 = sadd.s32 %s159, 1
      %p163 = scmp.eq.s32.totalorder %s20, 1
      %p164 = scmp.ne.s32.totalorder %s159, %s161
      %p165 = scmp.eq.s32.totalorder %s20, 0
      %p166 = por %p164, %p165
      %p167 = scmp.ne.s32.totalorder %s159, %s161
      %p168 = scmp.eq.s32.totalorder %s25, 1
      %p169 = por %p167, %p168
      %p170 = scmp.ne.s32.totalorder %s161, %s162
      %p171 = scmp.eq.s32.totalorder %s25, 0
      %p172 = por %p170, %p171
      %p173 = scmp.ne.s32.totalorder %s161, %s162
      %p174 = scmp.eq.s32.totalorder %s26, 1
      %p175 = por %p173, %p174
      %p177 = scmp.ne.s32.totalorder %s162, %s176
      %p178 = scmp.eq.s32.totalorder %s26, 0
      %p179 = por %p177, %p178
      %s181 = sadd.s32 %s180, 1
      %p184 = scmp.eq.s32.totalorder %s20, 1
      %p185 = scmp.ne.s32.totalorder %s180, %s182
      %p186 = scmp.eq.s32.totalorder %s20, 0
      %p187 = por %p185, %p186
      %p188 = scmp.ne.s32.totalorder %s180, %s182
      %p189 = scmp.eq.s32.totalorder %s25, 1
      %p190 = por %p188, %p189
      %p191 = scmp.ne.s32.totalorder %s182, %s183
      %p192 = scmp.eq.s32.totalorder %s25, 0
      %p193 = por %p191, %p192
      %p194 = scmp.ne.s32.totalorder %s182, %s183
      %p195 = scmp.eq.s32.totalorder %s26, 1
      %p196 = por %p194, %p195
      %p198 = scmp.ne.s32.totalorder %s183, %s197
      %p199 = scmp.eq.s32.totalorder %s26, 0
      %p200 = por %p198, %p199
      %s202 = sadd.s32 %s201, 1
      %p205 = scmp.eq.s32.totalorder %s20, 1
      %p206 = scmp.ne.s32.totalorder %s201, %s203
      %p207 = scmp.eq.s32.totalorder %s20, 0
      %p208 = por %p206, %p207
      %p209 = scmp.ne.s32.totalorder %s201, %s203
      %p210 = scmp.eq.s32.totalorder %s25, 1
      %p211 = por %p209, %p210
      %p212 = scmp.ne.s32.totalorder %s203, %s204
      %p213 = scmp.eq.s32.totalorder %s25, 0
      %p214 = por %p212, %p213
      %p215 = scmp.ne.s32.totalorder %s203, %s204
      %p216 = scmp.eq.s32.totalorder %s26, 1
      %p217 = por %p215, %p216
      %p219 = scmp.ne.s32.totalorder %s204, %s218
      %p220 = scmp.eq.s32.totalorder %s26, 0
      %p221 = por %p219, %p220
      %s222 = ssub.s32 %s20, %s27
      %p223 = scmp.eq.s32.totalorder %s222, 0
      %s225 = sadd.s32 %s224, 1
      %s226 = scalar_select %p223, %s224, %s225
      %p229 = pneg %p223
      %p230 = scmp.eq.s32.totalorder %s20, 1
      %p231 = por %p229, %p230
      %p232 = scmp.ne.s32.totalorder %s224, %s227
      %p233 = scmp.eq.s32.totalorder %s20, 0
      %p234 = por %p232, %p233
      %p235 = scmp.ne.s32.totalorder %s224, %s227
      %p236 = scmp.eq.s32.totalorder %s25, 1
      %p237 = por %p235, %p236
      %p238 = scmp.ne.s32.totalorder %s227, %s228
      %p239 = scmp.eq.s32.totalorder %s25, 0
      %p240 = por %p238, %p239
      %p241 = scmp.ne.s32.totalorder %s227, %s228
      %p242 = scmp.eq.s32.totalorder %s26, 1
      %p243 = por %p241, %p242
      %p245 = scmp.ne.s32.totalorder %s228, %s244
      %p246 = scmp.eq.s32.totalorder %s26, 0
      %p247 = por %p245, %p246
      %p248 = scmp.le.s32.totalorder 1, %s20
      %p249 = scmp.lt.s32.totalorder %s20, 3
      %p250 = pnand %p248, %p249
      %p251 = pneg %p250
      // Predicated region
      $region9: #{tpu_custom_call.1} parent=5 // pred_check
        _
      $region10: #{tpu_custom_call.1} parent=5 // pred_check_branch
        %253 = sbr.rel (%p250) target = $region12
      $region11: #{tpu_custom_call.1} parent=5 // pred_region
        %s254 = ssub.s32 %s20, 1
        // Predicated region
        $region13: #{tpu_custom_call.1} parent=11 // pred_check
          %p255 = pneg %p67
        $region14: #{tpu_custom_call.1} parent=11 // pred_check_branch
          %257 = sbr.rel (%p255) target = $region16
        $region15: #{tpu_custom_call.1} parent=11 // pred_region
          %s259 = ssub.s32 12288, 12288
          %260 = vsyncadd [#allocation3], %s259
          %s261 = sshll.u32 [#allocation2], 4
          %s262 = int_to_ptr.vmem [resolvable:$true] %s261
          %267 = dma.hbm_to_vmem [thread:$0]  %s1, 12288, %s262, [#allocation3], 384, 384, 24
        $region16: #{tpu_custom_call.1} parent=11 // pred_fallthru
          _
        // Predicated region
        $region17: #{tpu_custom_call.1} parent=11 // pred_check
          %p268 = pneg %p88
        $region18: #{tpu_custom_call.1} parent=11 // pred_check_branch
          %270 = sbr.rel (%p268) target = $region20
        $region19: #{tpu_custom_call.1} parent=11 // pred_region
          %s272 = ssub.s32 12288, 12288
          %273 = vsyncadd [#allocation6], %s272
          %s274 = sshll.u32 [#allocation5], 4
          %s275 = int_to_ptr.vmem [resolvable:$true] %s274
          %280 = dma.hbm_to_vmem [thread:$0]  %s2, 12288, %s275, [#allocation6], 256, 256, 16
        $region20: #{tpu_custom_call.1} parent=11 // pred_fallthru
          _
        // Predicated region
        $region21: #{tpu_custom_call.1} parent=11 // pred_check
          %p281 = pneg %p109
        $region22: #{tpu_custom_call.1} parent=11 // pred_check_branch
          %283 = sbr.rel (%p281) target = $region24
        $region23: #{tpu_custom_call.1} parent=11 // pred_region
          _
        $region24: #{tpu_custom_call.1} parent=11 // pred_fallthru
          _
        // Predicated region
        $region25: #{tpu_custom_call.1} parent=11 // pred_check
          %p284 = pneg %p130
        $region26: #{tpu_custom_call.1} parent=11 // pred_check_branch
          %286 = sbr.rel (%p284) target = $region28
        $region27: #{tpu_custom_call.1} parent=11 // pred_region
          _
        $region28: #{tpu_custom_call.1} parent=11 // pred_fallthru
          _
        // Predicated region
        $region29: #{tpu_custom_call.1} parent=11 // pred_check
          %p287 = pneg %p151
        $region30: #{tpu_custom_call.1} parent=11 // pred_check_branch
          %289 = sbr.rel (%p287) target = $region32
        $region31: #{tpu_custom_call.1} parent=11 // pred_region
          _
        $region32: #{tpu_custom_call.1} parent=11 // pred_fallthru
          _
        // Predicated region
        $region33: #{tpu_custom_call.1} parent=11 // pred_check
          %p290 = pneg %p172
        $region34: #{tpu_custom_call.1} parent=11 // pred_check_branch
          %292 = sbr.rel (%p290) target = $region36
        $region35: #{tpu_custom_call.1} parent=11 // pred_region
          _
        $region36: #{tpu_custom_call.1} parent=11 // pred_fallthru
          _
        // Predicated region
        $region37: #{tpu_custom_call.1} parent=11 // pred_check
          %p293 = pneg %p193
        $region38: #{tpu_custom_call.1} parent=11 // pred_check_branch
          %295 = sbr.rel (%p293) target = $region40
        $region39: #{tpu_custom_call.1} parent=11 // pred_region
          _
        $region40: #{tpu_custom_call.1} parent=11 // pred_fallthru
          _
        // Predicated region
        $region41: #{tpu_custom_call.1} parent=11 // pred_check
          %p296 = pneg %p214
        $region42: #{tpu_custom_call.1} parent=11 // pred_check_branch
          %298 = sbr.rel (%p296) target = $region44
        $region43: #{tpu_custom_call.1} parent=11 // pred_region
          _
        $region44: #{tpu_custom_call.1} parent=11 // pred_fallthru
          _
      $region12: #{tpu_custom_call.1} parent=5 // pred_fallthru
        _
      %p299 = scmp.lt.s32.totalorder %s20, 2
      // Predicated region
      $region45: #{tpu_custom_call.1} parent=5 // pred_check
        %p300 = pneg %p299
      $region46: #{tpu_custom_call.1} parent=5 // pred_check_branch
        %302 = sbr.rel (%p300) target = $region48
      $region47: #{tpu_custom_call.1} parent=5 // pred_region
        // Predicated region
        $region49: #{tpu_custom_call.1} parent=47 // pred_check
          %p303 = pneg %p40
        $region50: #{tpu_custom_call.1} parent=47 // pred_check_branch
          %305 = sbr.rel (%p303) target = $region52
        $region51: #{tpu_custom_call.1} parent=47 // pred_region
          %p306 = scmp.lt.s32.totalorder %s20, 1
          %s307 = scalar_select %p306, %s20, 1
          %s308 = smul.addr %s307, 2
          %s309 = smul.addr %s308, 8
          %s310 = scalar_lea.vmem %s0, %s309
        $region52: #{tpu_custom_call.1} parent=47 // pred_fallthru
          _
      $region48: #{tpu_custom_call.1} parent=5 // pred_fallthru
        _
      %p311 = scmp.le.s32.totalorder 1, %s20
      %p312 = scmp.lt.s32.totalorder %s20, 3
      %p313 = pnand %p311, %p312
      %p314 = pneg %p313
      // Predicated region
      $region53: #{tpu_custom_call.1} parent=5 // pred_check
        _
      $region54: #{tpu_custom_call.1} parent=5 // pred_check_branch
        %316 = sbr.rel (%p313) target = $region56
      $region55: #{tpu_custom_call.1} parent=5 // pred_region
        %s317 = ssub.s32 %s20, 1
        // Predicated region
        $region57: #{tpu_custom_call.1} parent=55 // pred_check
          %p318 = pneg %p67
        $region58: #{tpu_custom_call.1} parent=55 // pred_check_branch
          %320 = sbr.rel (%p318) target = $region60
        $region59: #{tpu_custom_call.1} parent=55 // pred_region
          %321 = dma.done [#allocation3], 12288
        $region60: #{tpu_custom_call.1} parent=55 // pred_fallthru
          _
        // Predicated region
        $region61: #{tpu_custom_call.1} parent=55 // pred_check
          %p322 = pneg %p88
        $region62: #{tpu_custom_call.1} parent=55 // pred_check_branch
          %324 = sbr.rel (%p322) target = $region64
        $region63: #{tpu_custom_call.1} parent=55 // pred_region
          %325 = dma.done [#allocation6], 12288
        $region64: #{tpu_custom_call.1} parent=55 // pred_fallthru
          _
        %p326 = scmp.lt.s32.totalorder %s25, 1
        %s327 = scalar_select %p326, %s25, 1
        %s328 = smul.addr %s327, 2
        %s329 = smul.addr %s328, 8
        %s330 = scalar_lea.vmem %s0, %s329
        %p331 = pneg %p46
        %p332 = pneg %p43
        %p333 = pneg %p67
        %p334 = pneg %p64
        %p335 = pneg %p88
        %p336 = pneg %p85
        %p337 = pneg %p109
        %p338 = pneg %p106
        %p339 = pneg %p130
        %p340 = pneg %p127
        %p341 = pneg %p151
        %p342 = pneg %p148
        %p343 = pneg %p172
        %p344 = pneg %p169
        %p345 = pneg %p193
        %p346 = pneg %p190
        %p347 = pneg %p214
        %p348 = pneg %p211
        %p349 = pneg %p240
        %p350 = pneg %p237
        %s351 = sand.u32 %s227, 1
        %s352 = scalar_lea.sflag [#allocation4], %s351
        %s353 = sand.u32 %s227, 1
        %s354 = smul.addr %s353, 16
        %s355 = scalar_lea.vmem [#allocation7], %s354
        %p356 = scmp.lt.s32.totalorder %s25, 1
        %s357 = scalar_select %p356, %s25, 1
        %s358 = smul.addr %s357, 2
        %s359 = smul.addr %s358, 8
        %s360 = scalar_lea.vmem %s0, %s359
        %v361 = vld [vmem:[%s3] sm:$0xff]
        %v362 = vld [vmem:[%s3 + $0x8] sm:$0xff]
        %v363 = vld [vmem:[%s4] sm:$0xff]
        %v364 = vld [vmem:[%s4 + $0x8] sm:$0xff]
        %v365 = vld [vmem:[#allocation2] sm:$0xff]
        %v366 = vld [vmem:[#allocation2 + $0x8] sm:$0xff]
        %v367 = vld [vmem:[#allocation2 + $0x10] sm:$0xff]
        %v368 = vld [vmem:[#allocation2 + $0x18] sm:$0xff]
        %v369 = vld [vmem:[#allocation2 + $0x20] sm:$0xff]
        %v370 = vld [vmem:[#allocation2 + $0x28] sm:$0xff]
        %v371 = vld [vmem:[#allocation2 + $0x30] sm:$0xff]
        %v372 = vld [vmem:[#allocation2 + $0x38] sm:$0xff]
        %v373 = vld [vmem:[#allocation2 + $0x40] sm:$0xff]
        %v374 = vld [vmem:[#allocation2 + $0x48] sm:$0xff]
        %v375 = vld [vmem:[#allocation2 + $0x50] sm:$0xff]
        %v376 = vld [vmem:[#allocation2 + $0x58] sm:$0xff]
        %v377 = vld [vmem:[#allocation2 + $0x60] sm:$0xff]
        %v378 = vld [vmem:[#allocation2 + $0x68] sm:$0xff]
        %v379 = vld [vmem:[#allocation2 + $0x70] sm:$0xff]
        %v380 = vld [vmem:[#allocation2 + $0x78] sm:$0xff]
        %v381 = vld [vmem:[#allocation2 + $0x80] sm:$0xff]
        %v382 = vld [vmem:[#allocation2 + $0x88] sm:$0xff]
        %v383 = vld [vmem:[#allocation2 + $0x90] sm:$0xff]
        %v384 = vld [vmem:[#allocation2 + $0x98] sm:$0xff]
        %v385 = vld [vmem:[#allocation2 + $0xa0] sm:$0xff]
        %v386 = vld [vmem:[#allocation2 + $0xa8] sm:$0xff]
        %v387 = vld [vmem:[#allocation2 + $0xb0] sm:$0xff]
        %v388 = vld [vmem:[#allocation2 + $0xb8] sm:$0xff]
        %v389 = vld [vmem:[#allocation2 + $0xc0] sm:$0xff]
        %v390 = vld [vmem:[#allocation2 + $0xc8] sm:$0xff]
        %v391 = vld [vmem:[#allocation2 + $0xd0] sm:$0xff]
        %v392 = vld [vmem:[#allocation2 + $0xd8] sm:$0xff]
        %v393 = vld [vmem:[#allocation2 + $0xe0] sm:$0xff]
        %v394 = vld [vmem:[#allocation2 + $0xe8] sm:$0xff]
        %v395 = vld [vmem:[#allocation2 + $0xf0] sm:$0xff]
        %v396 = vld [vmem:[#allocation2 + $0xf8] sm:$0xff]
        %v397 = vld [vmem:[#allocation2 + $0x100] sm:$0xff]
        %v398 = vld [vmem:[#allocation2 + $0x108] sm:$0xff]
        %v399 = vld [vmem:[#allocation2 + $0x110] sm:$0xff]
        %v400 = vld [vmem:[#allocation2 + $0x118] sm:$0xff]
        %v401 = vld [vmem:[#allocation2 + $0x120] sm:$0xff]
        %v402 = vld [vmem:[#allocation2 + $0x128] sm:$0xff]
        %v403 = vld [vmem:[#allocation2 + $0x130] sm:$0xff]
        %v404 = vld [vmem:[#allocation2 + $0x138] sm:$0xff]
        %v405 = vld [vmem:[#allocation2 + $0x140] sm:$0xff]
        %v406 = vld [vmem:[#allocation2 + $0x148] sm:$0xff]
        %v407 = vld [vmem:[#allocation2 + $0x150] sm:$0xff]
        %v408 = vld [vmem:[#allocation2 + $0x158] sm:$0xff]
        %v409 = vld [vmem:[#allocation2 + $0x160] sm:$0xff]
        %v410 = vld [vmem:[#allocation2 + $0x168] sm:$0xff]
        %v411 = vld [vmem:[#allocation2 + $0x170] sm:$0xff]
        %v412 = vld [vmem:[#allocation2 + $0x178] sm:$0xff]
        %v413 = vld [vmem:[#allocation2 + $0x180] sm:$0xff]
        %v414 = vld [vmem:[#allocation2 + $0x188] sm:$0xff]
        %v415 = vld [vmem:[#allocation2 + $0x190] sm:$0xff]
        %v416 = vld [vmem:[#allocation2 + $0x198] sm:$0xff]
        %v417 = vld [vmem:[#allocation2 + $0x1a0] sm:$0xff]
        %v418 = vld [vmem:[#allocation2 + $0x1a8] sm:$0xff]
        %v419 = vld [vmem:[#allocation2 + $0x1b0] sm:$0xff]
        %v420 = vld [vmem:[#allocation2 + $0x1b8] sm:$0xff]
        %v421 = vld [vmem:[#allocation2 + $0x1c0] sm:$0xff]
        %v422 = vld [vmem:[#allocation2 + $0x1c8] sm:$0xff]
        %v423 = vld [vmem:[#allocation2 + $0x1d0] sm:$0xff]
        %v424 = vld [vmem:[#allocation2 + $0x1d8] sm:$0xff]
        %v425 = vld [vmem:[#allocation2 + $0x1e0] sm:$0xff]
        %v426 = vld [vmem:[#allocation2 + $0x1e8] sm:$0xff]
        %v427 = vld [vmem:[#allocation2 + $0x1f0] sm:$0xff]
        %v428 = vld [vmem:[#allocation2 + $0x1f8] sm:$0xff]
        %v429 = vld [vmem:[#allocation2 + $0x200] sm:$0xff]
        %v430 = vld [vmem:[#allocation2 + $0x208] sm:$0xff]
        %v431 = vld [vmem:[#allocation2 + $0x210] sm:$0xff]
        %v432 = vld [vmem:[#allocation2 + $0x218] sm:$0xff]
        %v433 = vld [vmem:[#allocation2 + $0x220] sm:$0xff]
        %v434 = vld [vmem:[#allocation2 + $0x228] sm:$0xff]
        %v435 = vld [vmem:[#allocation2 + $0x230] sm:$0xff]
        %v436 = vld [vmem:[#allocation2 + $0x238] sm:$0xff]
        %v437 = vld [vmem:[#allocation2 + $0x240] sm:$0xff]
        %v438 = vld [vmem:[#allocation2 + $0x248] sm:$0xff]
        %v439 = vld [vmem:[#allocation2 + $0x250] sm:$0xff]
        %v440 = vld [vmem:[#allocation2 + $0x258] sm:$0xff]
        %v441 = vld [vmem:[#allocation2 + $0x260] sm:$0xff]
        %v442 = vld [vmem:[#allocation2 + $0x268] sm:$0xff]
        %v443 = vld [vmem:[#allocation2 + $0x270] sm:$0xff]
        %v444 = vld [vmem:[#allocation2 + $0x278] sm:$0xff]
        %v445 = vld [vmem:[#allocation2 + $0x280] sm:$0xff]
        %v446 = vld [vmem:[#allocation2 + $0x288] sm:$0xff]
        %v447 = vld [vmem:[#allocation2 + $0x290] sm:$0xff]
        %v448 = vld [vmem:[#allocation2 + $0x298] sm:$0xff]
        %v449 = vld [vmem:[#allocation2 + $0x2a0] sm:$0xff]
        %v450 = vld [vmem:[#allocation2 + $0x2a8] sm:$0xff]
        %v451 = vld [vmem:[#allocation2 + $0x2b0] sm:$0xff]
        %v452 = vld [vmem:[#allocation2 + $0x2b8] sm:$0xff]
        %v453 = vld [vmem:[#allocation2 + $0x2c0] sm:$0xff]
        %v454 = vld [vmem:[#allocation2 + $0x2c8] sm:$0xff]
        %v455 = vld [vmem:[#allocation2 + $0x2d0] sm:$0xff]
        %v456 = vld [vmem:[#allocation2 + $0x2d8] sm:$0xff]
        %v457 = vld [vmem:[#allocation2 + $0x2e0] sm:$0xff]
        %v458 = vld [vmem:[#allocation2 + $0x2e8] sm:$0xff]
        %v459 = vld [vmem:[#allocation2 + $0x2f0] sm:$0xff]
        %v460 = vld [vmem:[#allocation2 + $0x2f8] sm:$0xff]
        %v461 = vld [vmem:[#allocation5] sm:$0xff]
        %v462 = vld [vmem:[#allocation5 + $0x8] sm:$0xff]
        %v463 = vld [vmem:[#allocation5 + $0x10] sm:$0xff]
        %v464 = vld [vmem:[#allocation5 + $0x18] sm:$0xff]
        %v465 = vld [vmem:[#allocation5 + $0x20] sm:$0xff]
        %v466 = vld [vmem:[#allocation5 + $0x28] sm:$0xff]
        %v467 = vld [vmem:[#allocation5 + $0x30] sm:$0xff]
        %v468 = vld [vmem:[#allocation5 + $0x38] sm:$0xff]
        %v469 = vld [vmem:[#allocation5 + $0x40] sm:$0xff]
        %v470 = vld [vmem:[#allocation5 + $0x48] sm:$0xff]
        %v471 = vld [vmem:[#allocation5 + $0x50] sm:$0xff]
        %v472 = vld [vmem:[#allocation5 + $0x58] sm:$0xff]
        %v473 = vld [vmem:[#allocation5 + $0x60] sm:$0xff]
        %v474 = vld [vmem:[#allocation5 + $0x68] sm:$0xff]
        %v475 = vld [vmem:[#allocation5 + $0x70] sm:$0xff]
        %v476 = vld [vmem:[#allocation5 + $0x78] sm:$0xff]
        %v477 = vld [vmem:[#allocation5 + $0x80] sm:$0xff]
        %v478 = vld [vmem:[#allocation5 + $0x88] sm:$0xff]
        %v479 = vld [vmem:[#allocation5 + $0x90] sm:$0xff]
        %v480 = vld [vmem:[#allocation5 + $0x98] sm:$0xff]
        %v481 = vld [vmem:[#allocation5 + $0xa0] sm:$0xff]
        %v482 = vld [vmem:[#allocation5 + $0xa8] sm:$0xff]
        %v483 = vld [vmem:[#allocation5 + $0xb0] sm:$0xff]
        %v484 = vld [vmem:[#allocation5 + $0xb8] sm:$0xff]
        %v485 = vld [vmem:[#allocation5 + $0xc0] sm:$0xff]
        %v486 = vld [vmem:[#allocation5 + $0xc8] sm:$0xff]
        %v487 = vld [vmem:[#allocation5 + $0xd0] sm:$0xff]
        %v488 = vld [vmem:[#allocation5 + $0xd8] sm:$0xff]
        %v489 = vld [vmem:[#allocation5 + $0xe0] sm:$0xff]
        %v490 = vld [vmem:[#allocation5 + $0xe8] sm:$0xff]
        %v491 = vld [vmem:[#allocation5 + $0xf0] sm:$0xff]
        %v492 = vld [vmem:[#allocation5 + $0xf8] sm:$0xff]
        %v493 = vld [vmem:[#allocation5 + $0x100] sm:$0xff]
        %v494 = vld [vmem:[#allocation5 + $0x108] sm:$0xff]
        %v495 = vld [vmem:[#allocation5 + $0x110] sm:$0xff]
        %v496 = vld [vmem:[#allocation5 + $0x118] sm:$0xff]
        %v497 = vld [vmem:[#allocation5 + $0x120] sm:$0xff]
        %v498 = vld [vmem:[#allocation5 + $0x128] sm:$0xff]
        %v499 = vld [vmem:[#allocation5 + $0x130] sm:$0xff]
        %v500 = vld [vmem:[#allocation5 + $0x138] sm:$0xff]
        %v501 = vld [vmem:[#allocation5 + $0x140] sm:$0xff]
        %v502 = vld [vmem:[#allocation5 + $0x148] sm:$0xff]
        %v503 = vld [vmem:[#allocation5 + $0x150] sm:$0xff]
        %v504 = vld [vmem:[#allocation5 + $0x158] sm:$0xff]
        %v505 = vld [vmem:[#allocation5 + $0x160] sm:$0xff]
        %v506 = vld [vmem:[#allocation5 + $0x168] sm:$0xff]
        %v507 = vld [vmem:[#allocation5 + $0x170] sm:$0xff]
        %v508 = vld [vmem:[#allocation5 + $0x178] sm:$0xff]
        %v509 = vld [vmem:[#allocation5 + $0x180] sm:$0xff]
        %v510 = vld [vmem:[#allocation5 + $0x188] sm:$0xff]
        %v511 = vld [vmem:[#allocation5 + $0x190] sm:$0xff]
        %v512 = vld [vmem:[#allocation5 + $0x198] sm:$0xff]
        %v513 = vld [vmem:[#allocation5 + $0x1a0] sm:$0xff]
        %v514 = vld [vmem:[#allocation5 + $0x1a8] sm:$0xff]
        %v515 = vld [vmem:[#allocation5 + $0x1b0] sm:$0xff]
        %v516 = vld [vmem:[#allocation5 + $0x1b8] sm:$0xff]
        %v517 = vld [vmem:[#allocation5 + $0x1c0] sm:$0xff]
        %v518 = vld [vmem:[#allocation5 + $0x1c8] sm:$0xff]
        %v519 = vld [vmem:[#allocation5 + $0x1d0] sm:$0xff]
        %v520 = vld [vmem:[#allocation5 + $0x1d8] sm:$0xff]
        %v521 = vld [vmem:[#allocation5 + $0x1e0] sm:$0xff]
        %v522 = vld [vmem:[#allocation5 + $0x1e8] sm:$0xff]
        %v523 = vld [vmem:[#allocation5 + $0x1f0] sm:$0xff]
        %v524 = vld [vmem:[#allocation5 + $0x1f8] sm:$0xff]
        %v525 = vld [vmem:[#allocation5 + $0x200] sm:$0xff]
        %v526 = vld [vmem:[#allocation5 + $0x208] sm:$0xff]
        %v527 = vld [vmem:[#allocation5 + $0x210] sm:$0xff]
        %v528 = vld [vmem:[#allocation5 + $0x218] sm:$0xff]
        %v529 = vld [vmem:[#allocation5 + $0x220] sm:$0xff]
        %v530 = vld [vmem:[#allocation5 + $0x228] sm:$0xff]
        %v531 = vld [vmem:[#allocation5 + $0x230] sm:$0xff]
        %v532 = vld [vmem:[#allocation5 + $0x238] sm:$0xff]
        %v533 = vld [vmem:[#allocation5 + $0x240] sm:$0xff]
        %v534 = vld [vmem:[#allocation5 + $0x248] sm:$0xff]
        %v535 = vld [vmem:[#allocation5 + $0x250] sm:$0xff]
        %v536 = vld [vmem:[#allocation5 + $0x258] sm:$0xff]
        %v537 = vld [vmem:[#allocation5 + $0x260] sm:$0xff]
        %v538 = vld [vmem:[#allocation5 + $0x268] sm:$0xff]
        %v539 = vld [vmem:[#allocation5 + $0x270] sm:$0xff]
        %v540 = vld [vmem:[#allocation5 + $0x278] sm:$0xff]
        %v541 = vld [vmem:[#allocation5 + $0x280] sm:$0xff]
        %v542 = vld [vmem:[#allocation5 + $0x288] sm:$0xff]
        %v543 = vld [vmem:[#allocation5 + $0x290] sm:$0xff]
        %v544 = vld [vmem:[#allocation5 + $0x298] sm:$0xff]
        %v545 = vld [vmem:[#allocation5 + $0x2a0] sm:$0xff]
        %v546 = vld [vmem:[#allocation5 + $0x2a8] sm:$0xff]
        %v547 = vld [vmem:[#allocation5 + $0x2b0] sm:$0xff]
        %v548 = vld [vmem:[#allocation5 + $0x2b8] sm:$0xff]
        %v549 = vld [vmem:[#allocation5 + $0x2c0] sm:$0xff]
        %v550 = vld [vmem:[#allocation5 + $0x2c8] sm:$0xff]
        %v551 = vld [vmem:[#allocation5 + $0x2d0] sm:$0xff]
        %v552 = vld [vmem:[#allocation5 + $0x2d8] sm:$0xff]
        %v553 = vld [vmem:[#allocation5 + $0x2e0] sm:$0xff]
        %v554 = vld [vmem:[#allocation5 + $0x2e8] sm:$0xff]
        %v555 = vld [vmem:[#allocation5 + $0x2f0] sm:$0xff]
        %v556 = vld [vmem:[#allocation5 + $0x2f8] sm:$0xff]
        %v557 = vld [vmem:[%s5] sm:$0xff]
        %v558 = vld [vmem:[%s5 + $0x8] sm:$0xff]
        %v559 = vld [vmem:[%s6] sm:$0xff]
        %v560 = vld [vmem:[%s6 + $0x8] sm:$0xff]
        %v561 = vld [vmem:[%s7] sm:$0xff]
        %v562 = vld [vmem:[%s8] sm:$0xff]
        %v563 = vld [vmem:[%s360] sm:$0xff]
        %v564 = vld [vmem:[%s360 + $0x8] sm:$0xff]
        %566 = vset.pattern.permute.xlu0 0
        %567 = vperm.xlu0 %566, %v363
        %v568 = vpop.permute.xlu0 %567
        %571 = vset.pattern.permute.xlu0 0
        %572 = vperm.xlu0 %571, %v364
        %v573 = vpop.permute.xlu0 %572
        %vm575 = vcmask 64512
        %v577 = vsel %vm575, %v361, 0
        %v580 = vsel %vm575, %v362, 0
        %582 = vmatprep.subr.mxu0 %v564
        %583 = vmatpush1.msra.mxu0 %v563
        %584 = vmatprep.subr.mxu0 0.0
        %585 = vmatpush1.msra.mxu0 0.0
        %586 = vmatprep.subr.mxu0 0.0
        %587 = vmatpush1.msra.mxu0 0.0
        %588 = vmatprep.subr.mxu0 0.0
        %589 = vmatpush1.msra.mxu0 0.0
        %590 = vmatprep.subr.mxu0 0.0
        %591 = vmatpush1.msra.mxu0 0.0
        %592 = vmatprep.subr.mxu0 0.0
        %593 = vmatpush1.msra.mxu0 0.0
        %594 = vmatprep.subr.mxu0 0.0
        %595 = vmatpush1.msra.mxu0 0.0
        %596 = vmatprep.subr.mxu0 0.0
        %597 = vmatpush1.msra.mxu0 0.0
        %598 = vmatprep.subr.mxu0 0.0
        %599 = vmatpush1.msra.mxu0 0.0
        %600 = vmatprep.subr.mxu0 0.0
        %601 = vmatpush1.msra.mxu0 0.0
        %602 = vmatprep.subr.mxu0 0.0
        %603 = vmatpush1.msra.mxu0 0.0
        %604 = vmatprep.subr.mxu0 0.0
        %605 = vmatpush1.msra.mxu0 0.0
        %606 = vmatprep.subr.mxu0 0.0
        %607 = vmatpush1.msra.mxu0 0.0
        %608 = vmatprep.subr.mxu0 0.0
        %609 = vmatpush1.msra.mxu0 0.0
        %610 = vmatprep.subr.mxu0 0.0
        %611 = vmatpush1.msra.mxu0 0.0
        %612 = vmatprep.subr.mxu0 0.0
        %613 = vmatpush1.msra.mxu0 0.0
        %614 = vmatprep.subr.mxu0 0.0
        %615 = vmatpush1.msra.mxu0 0.0
        %616 = vmatprep.subr.mxu0 0.0
        %617 = vmatpush1.msra.mxu0 0.0
        %618 = vmatprep.subr.mxu0 0.0
        %619 = vmatpush1.msra.mxu0 0.0
        %620 = vmatprep.subr.mxu0 0.0
        %621 = vmatpush1.msra.mxu0 0.0
        %622 = vmatprep.subr.mxu0 0.0
        %623 = vmatpush1.msra.mxu0 0.0
        %624 = vmatprep.subr.mxu0 0.0
        %625 = vmatpush1.msra.mxu0 0.0
        %626 = vmatprep.subr.mxu0 0.0
        %627 = vmatpush1.msra.mxu0 0.0
        %628 = vmatprep.subr.mxu0 0.0
        %629 = vmatpush1.msra.mxu0 0.0
        %630 = vmatprep.subr.mxu0 0.0
        %631 = vmatpush1.msra.mxu0 0.0
        %632 = vmatprep.subr.mxu0 0.0
        %633 = vmatpush1.msra.mxu0 0.0
        %634 = vmatprep.subr.mxu0 0.0
        %635 = vmatpush1.msra.mxu0 0.0
        %636 = vmatprep.subr.mxu0 0.0
        %637 = vmatpush1.msra.mxu0 0.0
        %638 = vmatprep.subr.mxu0 0.0
        %639 = vmatpush1.msra.mxu0 0.0
        %640 = vmatprep.subr.mxu0 0.0
        %641 = vmatpush1.msra.mxu0 0.0
        %642 = vmatprep.subr.mxu0 0.0
        %643 = vmatpush1.msra.mxu0 0.0
        %644 = vmatprep.subr.mxu0 0.0
        %645 = vmatpush1.msra.mxu0 0.0
        %646 = vmatprep.mubr.f32.mxu0 0.0
        %647 = vmatmul.mubr.f32.gmra.mrb[0].mxu0 %v577
        %v648 = vpop.f32.mrb[0].mxu0
        %v649 = vadd.f32 %v568, %v648
        %v650 = vpop.f32.mrb[0].mxu0
        %v651 = vadd.f32 %v568, %v650
        %652 = vmatprep.mubr.f32.mxu0 0.0
        %653 = vmatmul.mubr.f32.gmra.mrb[0].mxu0 %v580
        %v654 = vpop.f32.mrb[0].mxu0
        %v655 = vadd.f32 %v573, %v654
        %v656 = vpop.f32.mrb[0].mxu0
        %v657 = vadd.f32 %v573, %v656
        %658 = vdwg.mxu0
        %v659 = vadd.f32 %v649, 3.0
        %v660 = vadd.f32 %v651, 3.0
        %v661 = vadd.f32 %v655, 3.0
        %v662 = vadd.f32 %v657, 3.0
        %v663 = vmax.f32 %v659, 0.0
        %v664 = vmax.f32 %v660, 0.0
        %v665 = vmax.f32 %v661, 0.0
        %v666 = vmax.f32 %v662, 0.0
        %v667 = vmin.f32 %v663, 6.0
        %v668 = vmin.f32 %v664, 6.0
        %v669 = vmin.f32 %v665, 6.0
        %v670 = vmin.f32 %v666, 6.0
        %v671 = vmul.f32 %v649, %v667
        %v672 = vmul.f32 %v651, %v668
        %v673 = vmul.f32 %v655, %v669
        %v674 = vmul.f32 %v657, %v670
        %v675 = vmul.f32 %v671, 0.16666667
        %v676 = vmul.f32 %v672, 0.16666667
        %v677 = vmul.f32 %v673, 0.16666667
        %v678 = vmul.f32 %v674, 0.16666667
        %679 = vmatprep.subr.mxu0 %v366
        %680 = vmatpush1.msra.mxu0 %v365
        %681 = vmatprep.subr.mxu0 %v369
        %682 = vmatpush1.msra.mxu0 %v368
        %683 = vmatprep.subr.mxu0 %v372
        %684 = vmatpush1.msra.mxu0 %v371
        %685 = vmatprep.subr.mxu0 %v375
        %686 = vmatpush1.msra.mxu0 %v374
        %687 = vmatprep.subr.mxu0 %v378
        %688 = vmatpush1.msra.mxu0 %v377
        %689 = vmatprep.subr.mxu0 %v381
        %690 = vmatpush1.msra.mxu0 %v380
        %691 = vmatprep.subr.mxu0 %v384
        %692 = vmatpush1.msra.mxu0 %v383
        %693 = vmatprep.subr.mxu0 %v387
        %694 = vmatpush1.msra.mxu0 %v386
        %695 = vmatprep.subr.mxu0 %v390
        %696 = vmatpush1.msra.mxu0 %v389
        %697 = vmatprep.subr.mxu0 %v393
        %698 = vmatpush1.msra.mxu0 %v392
        %699 = vmatprep.subr.mxu0 %v396
        %700 = vmatpush1.msra.mxu0 %v395
        %701 = vmatprep.subr.mxu0 %v399
        %702 = vmatpush1.msra.mxu0 %v398
        %703 = vmatprep.subr.mxu0 %v402
        %704 = vmatpush1.msra.mxu0 %v401
        %705 = vmatprep.subr.mxu0 %v405
        %706 = vmatpush1.msra.mxu0 %v404
        %707 = vmatprep.subr.mxu0 %v408
        %708 = vmatpush1.msra.mxu0 %v407
        %709 = vmatprep.subr.mxu0 %v411
        %710 = vmatpush1.msra.mxu0 %v410
        %711 = vmatprep.subr.mxu0 %v414
        %712 = vmatpush1.msra.mxu0 %v413
        %713 = vmatprep.subr.mxu0 %v417
        %714 = vmatpush1.msra.mxu0 %v416
        %715 = vmatprep.subr.mxu0 %v420
        %716 = vmatpush1.msra.mxu0 %v419
        %717 = vmatprep.subr.mxu0 %v423
        %718 = vmatpush1.msra.mxu0 %v422
        %719 = vmatprep.subr.mxu0 %v426
        %720 = vmatpush1.msra.mxu0 %v425
        %721 = vmatprep.subr.mxu0 %v429
        %722 = vmatpush1.msra.mxu0 %v428
        %723 = vmatprep.subr.mxu0 %v432
        %724 = vmatpush1.msra.mxu0 %v431
        %725 = vmatprep.subr.mxu0 %v435
        %726 = vmatpush1.msra.mxu0 %v434
        %727 = vmatprep.subr.mxu0 %v438
        %728 = vmatpush1.msra.mxu0 %v437
        %729 = vmatprep.subr.mxu0 %v441
        %730 = vmatpush1.msra.mxu0 %v440
        %731 = vmatprep.subr.mxu0 %v444
        %732 = vmatpush1.msra.mxu0 %v443
        %733 = vmatprep.subr.mxu0 %v447
        %734 = vmatpush1.msra.mxu0 %v446
        %735 = vmatprep.subr.mxu0 %v450
        %736 = vmatpush1.msra.mxu0 %v449
        %737 = vmatprep.subr.mxu0 %v453
        %738 = vmatpush1.msra.mxu0 %v452
        %739 = vmatprep.subr.mxu0 %v456
        %740 = vmatpush1.msra.mxu0 %v455
        %741 = vmatprep.subr.mxu0 %v459
        %742 = vmatpush1.msra.mxu0 %v458
        %743 = vmatprep.mubr.f32.mxu0 %v676
        %744 = vmatmul.mubr.f32.gmra.mrb[0].mxu0 %v675
        %v745 = vpop.f32.mrb[0].mxu0
        %v746 = vadd.f32 0.0, %v745
        %v747 = vpop.f32.mrb[0].mxu0
        %v748 = vadd.f32 0.0, %v747
        %749 = vmatprep.mubr.f32.mxu0 %v678
        %750 = vmatmul.mubr.f32.gmra.mrb[0].mxu0 %v677
        %v751 = vpop.f32.mrb[0].mxu0
        %v752 = vadd.f32 0.0, %v751
        %v753 = vpop.f32.mrb[0].mxu0
        %v754 = vadd.f32 0.0, %v753
        %755 = vdwg.mxu0
        %756 = vmatprep.subr.mxu0 0.0
        %757 = vmatpush1.msra.mxu0 %v367
        %758 = vmatprep.subr.mxu0 0.0
        %759 = vmatpush1.msra.mxu0 %v370
        %760 = vmatprep.subr.mxu0 0.0
        %761 = vmatpush1.msra.mxu0 %v373
        %762 = vmatprep.subr.mxu0 0.0
        %763 = vmatpush1.msra.mxu0 %v376
        %764 = vmatprep.subr.mxu0 0.0
        %765 = vmatpush1.msra.mxu0 %v379
        %766 = vmatprep.subr.mxu0 0.0
        %767 = vmatpush1.msra.mxu0 %v382
        %768 = vmatprep.subr.mxu0 0.0
        %769 = vmatpush1.msra.mxu0 %v385
        %770 = vmatprep.subr.mxu0 0.0
        %771 = vmatpush1.msra.mxu0 %v388
        %772 = vmatprep.subr.mxu0 0.0
        %773 = vmatpush1.msra.mxu0 %v391
        %774 = vmatprep.subr.mxu0 0.0
        %775 = vmatpush1.msra.mxu0 %v394
        %776 = vmatprep.subr.mxu0 0.0
        %777 = vmatpush1.msra.mxu0 %v397
        %778 = vmatprep.subr.mxu0 0.0
        %779 = vmatpush1.msra.mxu0 %v400
        %780 = vmatprep.subr.mxu0 0.0
        %781 = vmatpush1.msra.mxu0 %v403
        %782 = vmatprep.subr.mxu0 0.0
        %783 = vmatpush1.msra.mxu0 %v406
        %784 = vmatprep.subr.mxu0 0.0
        %785 = vmatpush1.msra.mxu0 %v409
        %786 = vmatprep.subr.mxu0 0.0
        %787 = vmatpush1.msra.mxu0 %v412
        %788 = vmatprep.subr.mxu0 0.0
        %789 = vmatpush1.msra.mxu0 %v415
        %790 = vmatprep.subr.mxu0 0.0
        %791 = vmatpush1.msra.mxu0 %v418
        %792 = vmatprep.subr.mxu0 0.0
        %793 = vmatpush1.msra.mxu0 %v421
        %794 = vmatprep.subr.mxu0 0.0
        %795 = vmatpush1.msra.mxu0 %v424
        %796 = vmatprep.subr.mxu0 0.0
        %797 = vmatpush1.msra.mxu0 %v427
        %798 = vmatprep.subr.mxu0 0.0
        %799 = vmatpush1.msra.mxu0 %v430
        %800 = vmatprep.subr.mxu0 0.0
        %801 = vmatpush1.msra.mxu0 %v433
        %802 = vmatprep.subr.mxu0 0.0
        %803 = vmatpush1.msra.mxu0 %v436
        %804 = vmatprep.subr.mxu0 0.0
        %805 = vmatpush1.msra.mxu0 %v439
        %806 = vmatprep.subr.mxu0 0.0
        %807 = vmatpush1.msra.mxu0 %v442
        %808 = vmatprep.subr.mxu0 0.0
        %809 = vmatpush1.msra.mxu0 %v445
        %810 = vmatprep.subr.mxu0 0.0
        %811 = vmatpush1.msra.mxu0 %v448
        %812 = vmatprep.subr.mxu0 0.0
        %813 = vmatpush1.msra.mxu0 %v451
        %814 = vmatprep.subr.mxu0 0.0
        %815 = vmatpush1.msra.mxu0 %v454
        %816 = vmatprep.subr.mxu0 0.0
        %817 = vmatpush1.msra.mxu0 %v457
        %818 = vmatprep.subr.mxu0 0.0
        %819 = vmatpush1.msra.mxu0 %v460
        %820 = vmatprep.mubr.f32.mxu0 %v676
        %821 = vmatmul.mubr.f32.gmra.mrb[0].mxu0 %v675
        %v822 = vpop.f32.mrb[0].mxu0
        %v823 = vadd.f32 0.0, %v822
        %v824 = vpop.f32.mrb[0].mxu0
        %825 = vmatprep.mubr.f32.mxu0 %v678
        %826 = vmatmul.mubr.f32.gmra.mrb[0].mxu0 %v677
        %v827 = vpop.f32.mrb[0].mxu0
        %v828 = vadd.f32 0.0, %v827
        %v829 = vpop.f32.mrb[0].mxu0
        %830 = vdwg.mxu0
        %832 = vset.pattern.permute.xlu0 0
        %833 = vperm.xlu0 %832, %v557
        %v834 = vpop.permute.xlu0 %833
        %837 = vset.pattern.permute.xlu0 0
        %838 = vperm.xlu0 %837, %v558
        %v839 = vpop.permute.xlu0 %838
        %v841 = vmul.f32 %v746, %v834
        %v842 = vmul.f32 %v748, %v834
        %v843 = vmul.f32 %v823, %v834
        %v844 = vmul.f32 %v752, %v839
        %v845 = vmul.f32 %v754, %v839
        %v846 = vmul.f32 %v828, %v839
        %853 = vrot.lane.b32.xlu0 %v746, 127
        %v854 = vpop.permute.xlu0 %853
        %855 = vrot.lane.b32.xlu0 %v748, 127
        %v856 = vpop.permute.xlu0 %855
        %857 = vrot.lane.b32.xlu0 %v823, 127
        %v858 = vpop.permute.xlu0 %857
        %859 = vrot.lane.b32.xlu0 %v752, 127
        %v860 = vpop.permute.xlu0 %859
        %861 = vrot.lane.b32.xlu0 %v754, 127
        %v862 = vpop.permute.xlu0 %861
        %863 = vrot.lane.b32.xlu0 %v828, 127
        %v864 = vpop.permute.xlu0 %863
        %vm865 = vcmask 1039360
        %v866 = vsel %vm865, %v854, %v856
        %v867 = vsel %vm865, %v856, %v858
        %v868 = vsel %vm865, %v860, %v862
        %v869 = vsel %vm865, %v862, %v864
        %v878 = vsel %vm865, %v858, %v854
        %v879 = vsel %vm865, %v864, %v860
        %880 = vset.pattern.permute.xlu0 1
        %881 = vperm.xlu0 %880, %v557
        %v882 = vpop.permute.xlu0 %881
        %884 = vset.pattern.permute.xlu0 1
        %885 = vperm.xlu0 %884, %v558
        %v886 = vpop.permute.xlu0 %885
        %v888 = vmul.f32 %v866, %v882
        %v889 = vmul.f32 %v867, %v882
        %v890 = vmul.f32 %v878, %v882
        %v891 = vmul.f32 %v868, %v886
        %v892 = vmul.f32 %v869, %v886
        %v893 = vmul.f32 %v879, %v886
        %v894 = vadd.f32 %v841, %v888
        %v895 = vadd.f32 %v842, %v889
        %v896 = vadd.f32 %v843, %v890
        %v897 = vadd.f32 %v844, %v891
        %v898 = vadd.f32 %v845, %v892
        %v899 = vadd.f32 %v846, %v893
        %900 = vrot.lane.b32.xlu0 %v746, 126
        %v901 = vpop.permute.xlu0 %900
        %902 = vrot.lane.b32.xlu0 %v748, 126
        %v903 = vpop.permute.xlu0 %902
        %904 = vrot.lane.b32.xlu0 %v823, 126
        %v905 = vpop.permute.xlu0 %904
        %906 = vrot.lane.b32.xlu0 %v752, 126
        %v907 = vpop.permute.xlu0 %906
        %908 = vrot.lane.b32.xlu0 %v754, 126
        %v909 = vpop.permute.xlu0 %908
        %910 = vrot.lane.b32.xlu0 %v828, 126
        %v911 = vpop.permute.xlu0 %910
        %vm912 = vcmask 1031168
        %v913 = vsel %vm912, %v901, %v903
        %v914 = vsel %vm912, %v903, %v905
        %v915 = vsel %vm912, %v907, %v909
        %v916 = vsel %vm912, %v909, %v911
        %v925 = vsel %vm912, %v905, %v901
        %v926 = vsel %vm912, %v911, %v907
        %927 = vset.pattern.permute.xlu0 2
        %928 = vperm.xlu0 %927, %v557
        %v929 = vpop.permute.xlu0 %928
        %931 = vset.pattern.permute.xlu0 2
        %932 = vperm.xlu0 %931, %v558
        %v933 = vpop.permute.xlu0 %932
        %v935 = vmul.f32 %v913, %v929
        %v936 = vmul.f32 %v914, %v929
        %v937 = vmul.f32 %v925, %v929
        %v938 = vmul.f32 %v915, %v933
        %v939 = vmul.f32 %v916, %v933
        %v940 = vmul.f32 %v926, %v933
        %v941 = vadd.f32 %v894, %v935
        %v942 = vadd.f32 %v895, %v936
        %v943 = vadd.f32 %v896, %v937
        %v944 = vadd.f32 %v897, %v938
        %v945 = vadd.f32 %v898, %v939
        %v946 = vadd.f32 %v899, %v940
        %947 = vrot.lane.b32.xlu0 %v746, 110
        %v948 = vpop.permute.xlu0 %947
        %949 = vrot.lane.b32.xlu0 %v748, 110
        %v950 = vpop.permute.xlu0 %949
        %951 = vrot.lane.b32.xlu0 %v823, 110
        %v952 = vpop.permute.xlu0 %951
        %953 = vrot.lane.b32.xlu0 %v752, 110
        %v954 = vpop.permute.xlu0 %953
        %955 = vrot.lane.b32.xlu0 %v754, 110
        %v956 = vpop.permute.xlu0 %955
        %957 = vrot.lane.b32.xlu0 %v828, 110
        %v958 = vpop.permute.xlu0 %957
        %vm959 = vcmask 900096
        %v960 = vsel %vm959, %v948, %v950
        %v961 = vsel %vm959, %v950, %v952
        %v962 = vsel %vm959, %v954, %v956
        %v963 = vsel %vm959, %v956, %v958
        %v972 = vsel %vm959, %v952, %v948
        %v973 = vsel %vm959, %v958, %v954
        %974 = vset.pattern.permute.xlu0 3
        %975 = vperm.xlu0 %974, %v557
        %v976 = vpop.permute.xlu0 %975
        %978 = vset.pattern.permute.xlu0 3
        %979 = vperm.xlu0 %978, %v558
        %v980 = vpop.permute.xlu0 %979
        %v982 = vmul.f32 %v960, %v976
        %v983 = vmul.f32 %v961, %v976
        %v984 = vmul.f32 %v972, %v976
        %v985 = vmul.f32 %v962, %v980
        %v986 = vmul.f32 %v963, %v980
        %v987 = vmul.f32 %v973, %v980
        %v988 = vadd.f32 %v941, %v982
        %v989 = vadd.f32 %v942, %v983
        %v990 = vadd.f32 %v943, %v984
        %v991 = vadd.f32 %v944, %v985
        %v992 = vadd.f32 %v945, %v986
        %v993 = vadd.f32 %v946, %v987
        %994 = vrot.lane.b32.xlu0 %v746, 109
        %v995 = vpop.permute.xlu0 %994
        %996 = vrot.lane.b32.xlu0 %v748, 109
        %v997 = vpop.permute.xlu0 %996
        %998 = vrot.lane.b32.xlu0 %v823, 109
        %v999 = vpop.permute.xlu0 %998
        %1000 = vrot.lane.b32.xlu0 %v752, 109
        %v1001 = vpop.permute.xlu0 %1000
        %1002 = vrot.lane.b32.xlu0 %v754, 109
        %v1003 = vpop.permute.xlu0 %1002
        %1004 = vrot.lane.b32.xlu0 %v828, 109
        %v1005 = vpop.permute.xlu0 %1004
        %vm1006 = vcmask 891904
        %v1007 = vsel %vm1006, %v995, %v997
        %v1008 = vsel %vm1006, %v997, %v999
        %v1009 = vsel %vm1006, %v1001, %v1003
        %v1010 = vsel %vm1006, %v1003, %v1005
        %v1019 = vsel %vm1006, %v999, %v995
        %v1020 = vsel %vm1006, %v1005, %v1001
        %1021 = vset.pattern.permute.xlu0 4
        %1022 = vperm.xlu0 %1021, %v557
        %v1023 = vpop.permute.xlu0 %1022
        %1025 = vset.pattern.permute.xlu0 4
        %1026 = vperm.xlu0 %1025, %v558
        %v1027 = vpop.permute.xlu0 %1026
        %v1029 = vmul.f32 %v1007, %v1023
        %v1030 = vmul.f32 %v1008, %v1023
        %v1031 = vmul.f32 %v1019, %v1023
        %v1032 = vmul.f32 %v1009, %v1027
        %v1033 = vmul.f32 %v1010, %v1027
        %v1034 = vmul.f32 %v1020, %v1027
        %v1035 = vadd.f32 %v988, %v1029
        %v1036 = vadd.f32 %v989, %v1030
        %v1037 = vadd.f32 %v990, %v1031
        %v1038 = vadd.f32 %v991, %v1032
        %v1039 = vadd.f32 %v992, %v1033
        %v1040 = vadd.f32 %v993, %v1034
        %1041 = vrot.lane.b32.xlu0 %v746, 108
        %v1042 = vpop.permute.xlu0 %1041
        %1043 = vrot.lane.b32.xlu0 %v748, 108
        %v1044 = vpop.permute.xlu0 %1043
        %1045 = vrot.lane.b32.xlu0 %v823, 108
        %v1046 = vpop.permute.xlu0 %1045
        %1047 = vrot.lane.b32.xlu0 %v752, 108
        %v1048 = vpop.permute.xlu0 %1047
        %1049 = vrot.lane.b32.xlu0 %v754, 108
        %v1050 = vpop.permute.xlu0 %1049
        %1051 = vrot.lane.b32.xlu0 %v828, 108
        %v1052 = vpop.permute.xlu0 %1051
        %vm1053 = vcmask 883712
        %v1054 = vsel %vm1053, %v1042, %v1044
        %v1055 = vsel %vm1053, %v1044, %v1046
        %v1056 = vsel %vm1053, %v1048, %v1050
        %v1057 = vsel %vm1053, %v1050, %v1052
        %v1066 = vsel %vm1053, %v1046, %v1042
        %v1067 = vsel %vm1053, %v1052, %v1048
        %1068 = vset.pattern.permute.xlu0 5
        %1069 = vperm.xlu0 %1068, %v557
        %v1070 = vpop.permute.xlu0 %1069
        %1072 = vset.pattern.permute.xlu0 5
        %1073 = vperm.xlu0 %1072, %v558
        %v1074 = vpop.permute.xlu0 %1073
        %v1076 = vmul.f32 %v1054, %v1070
        %v1077 = vmul.f32 %v1055, %v1070
        %v1078 = vmul.f32 %v1066, %v1070
        %v1079 = vmul.f32 %v1056, %v1074
        %v1080 = vmul.f32 %v1057, %v1074
        %v1081 = vmul.f32 %v1067, %v1074
        %v1082 = vadd.f32 %v1035, %v1076
        %v1083 = vadd.f32 %v1036, %v1077
        %v1084 = vadd.f32 %v1037, %v1078
        %v1085 = vadd.f32 %v1038, %v1079
        %v1086 = vadd.f32 %v1039, %v1080
        %v1087 = vadd.f32 %v1040, %v1081
        %1088 = vrot.lane.b32.xlu0 %v746, 92
        %v1089 = vpop.permute.xlu0 %1088
        %1090 = vrot.lane.b32.xlu0 %v748, 92
        %v1091 = vpop.permute.xlu0 %1090
        %1092 = vrot.lane.b32.xlu0 %v823, 92
        %v1093 = vpop.permute.xlu0 %1092
        %1094 = vrot.lane.b32.xlu0 %v752, 92
        %v1095 = vpop.permute.xlu0 %1094
        %1096 = vrot.lane.b32.xlu0 %v754, 92
        %v1097 = vpop.permute.xlu0 %1096
        %1098 = vrot.lane.b32.xlu0 %v828, 92
        %v1099 = vpop.permute.xlu0 %1098
        %vm1100 = vcmask 752640
        %v1101 = vsel %vm1100, %v1089, %v1091
        %v1102 = vsel %vm1100, %v1091, %v1093
        %v1103 = vsel %vm1100, %v1095, %v1097
        %v1104 = vsel %vm1100, %v1097, %v1099
        %v1113 = vsel %vm1100, %v1093, %v1089
        %v1114 = vsel %vm1100, %v1099, %v1095
        %1115 = vset.pattern.permute.xlu0 6
        %1116 = vperm.xlu0 %1115, %v557
        %v1117 = vpop.permute.xlu0 %1116
        %1119 = vset.pattern.permute.xlu0 6
        %1120 = vperm.xlu0 %1119, %v558
        %v1121 = vpop.permute.xlu0 %1120
        %v1123 = vmul.f32 %v1101, %v1117
        %v1124 = vmul.f32 %v1102, %v1117
        %v1125 = vmul.f32 %v1113, %v1117
        %v1126 = vmul.f32 %v1103, %v1121
        %v1127 = vmul.f32 %v1104, %v1121
        %v1128 = vmul.f32 %v1114, %v1121
        %v1129 = vadd.f32 %v1082, %v1123
        %v1130 = vadd.f32 %v1083, %v1124
        %v1131 = vadd.f32 %v1084, %v1125
        %v1132 = vadd.f32 %v1085, %v1126
        %v1133 = vadd.f32 %v1086, %v1127
        %v1134 = vadd.f32 %v1087, %v1128
        %1135 = vrot.lane.b32.xlu0 %v746, 91
        %v1136 = vpop.permute.xlu0 %1135
        %1137 = vrot.lane.b32.xlu0 %v748, 91
        %v1138 = vpop.permute.xlu0 %1137
        %1139 = vrot.lane.b32.xlu0 %v823, 91
        %v1140 = vpop.permute.xlu0 %1139
        %1141 = vrot.lane.b32.xlu0 %v752, 91
        %v1142 = vpop.permute.xlu0 %1141
        %1143 = vrot.lane.b32.xlu0 %v754, 91
        %v1144 = vpop.permute.xlu0 %1143
        %1145 = vrot.lane.b32.xlu0 %v828, 91
        %v1146 = vpop.permute.xlu0 %1145
        %vm1147 = vcmask 744448
        %v1148 = vsel %vm1147, %v1136, %v1138
        %v1149 = vsel %vm1147, %v1138, %v1140
        %v1150 = vsel %vm1147, %v1142, %v1144
        %v1151 = vsel %vm1147, %v1144, %v1146
        %v1160 = vsel %vm1147, %v1140, %v1136
        %v1161 = vsel %vm1147, %v1146, %v1142
        %1162 = vset.pattern.permute.xlu0 7
        %1163 = vperm.xlu0 %1162, %v557
        %v1164 = vpop.permute.xlu0 %1163
        %1166 = vset.pattern.permute.xlu0 7
        %1167 = vperm.xlu0 %1166, %v558
        %v1168 = vpop.permute.xlu0 %1167
        %v1170 = vmul.f32 %v1148, %v1164
        %v1171 = vmul.f32 %v1149, %v1164
        %v1172 = vmul.f32 %v1160, %v1164
        %v1173 = vmul.f32 %v1150, %v1168
        %v1174 = vmul.f32 %v1151, %v1168
        %v1175 = vmul.f32 %v1161, %v1168
        %v1176 = vadd.f32 %v1129, %v1170
        %v1177 = vadd.f32 %v1130, %v1171
        %v1178 = vadd.f32 %v1131, %v1172
        %v1179 = vadd.f32 %v1132, %v1173
        %v1180 = vadd.f32 %v1133, %v1174
        %v1181 = vadd.f32 %v1134, %v1175
        %1182 = vrot.lane.b32.xlu0 %v746, 90
        %v1183 = vpop.permute.xlu0 %1182
        %1184 = vrot.lane.b32.xlu0 %v748, 90
        %v1185 = vpop.permute.xlu0 %1184
        %1186 = vrot.lane.b32.xlu0 %v823, 90
        %v1187 = vpop.permute.xlu0 %1186
        %1188 = vrot.lane.b32.xlu0 %v752, 90
        %v1189 = vpop.permute.xlu0 %1188
        %1190 = vrot.lane.b32.xlu0 %v754, 90
        %v1191 = vpop.permute.xlu0 %1190
        %1192 = vrot.lane.b32.xlu0 %v828, 90
        %v1193 = vpop.permute.xlu0 %1192
        %vm1194 = vcmask 736256
        %v1195 = vsel %vm1194, %v1183, %v1185
        %v1196 = vsel %vm1194, %v1185, %v1187
        %v1197 = vsel %vm1194, %v1189, %v1191
        %v1198 = vsel %vm1194, %v1191, %v1193
        %v1207 = vsel %vm1194, %v1187, %v1183
        %v1208 = vsel %vm1194, %v1193, %v1189
        %1209 = vset.pattern.permute.xlu0 8
        %1210 = vperm.xlu0 %1209, %v557
        %v1211 = vpop.permute.xlu0 %1210
        %1213 = vset.pattern.permute.xlu0 8
        %1214 = vperm.xlu0 %1213, %v558
        %v1215 = vpop.permute.xlu0 %1214
        %v1217 = vmul.f32 %v1195, %v1211
        %v1218 = vmul.f32 %v1196, %v1211
        %v1219 = vmul.f32 %v1207, %v1211
        %v1220 = vmul.f32 %v1197, %v1215
        %v1221 = vmul.f32 %v1198, %v1215
        %v1222 = vmul.f32 %v1208, %v1215
        %v1223 = vadd.f32 %v1176, %v1217
        %v1224 = vadd.f32 %v1177, %v1218
        %v1225 = vadd.f32 %v1178, %v1219
        %v1226 = vadd.f32 %v1179, %v1220
        %v1227 = vadd.f32 %v1180, %v1221
        %v1228 = vadd.f32 %v1181, %v1222
        %1230 = vset.pattern.permute.xlu0 0
        %1231 = vperm.xlu0 %1230, %v559
        %v1232 = vpop.permute.xlu0 %1231
        %1235 = vset.pattern.permute.xlu0 0
        %1236 = vperm.xlu0 %1235, %v560
        %v1237 = vpop.permute.xlu0 %1236
        %1239 = vmatprep.subr.mxu0 %v462
        %1240 = vmatpush1.msra.mxu0 %v461
        %1241 = vmatprep.subr.mxu0 %v464
        %1242 = vmatpush1.msra.mxu0 %v463
        %1243 = vmatprep.subr.mxu0 %v466
        %1244 = vmatpush1.msra.mxu0 %v465
        %1245 = vmatprep.subr.mxu0 %v468
        %1246 = vmatpush1.msra.mxu0 %v467
        %1247 = vmatprep.subr.mxu0 %v470
        %1248 = vmatpush1.msra.mxu0 %v469
        %1249 = vmatprep.subr.mxu0 %v472
        %1250 = vmatpush1.msra.mxu0 %v471
        %1251 = vmatprep.subr.mxu0 %v474
        %1252 = vmatpush1.msra.mxu0 %v473
        %1253 = vmatprep.subr.mxu0 %v476
        %1254 = vmatpush1.msra.mxu0 %v475
        %1255 = vmatprep.subr.mxu0 %v478
        %1256 = vmatpush1.msra.mxu0 %v477
        %1257 = vmatprep.subr.mxu0 %v480
        %1258 = vmatpush1.msra.mxu0 %v479
        %1259 = vmatprep.subr.mxu0 %v482
        %1260 = vmatpush1.msra.mxu0 %v481
        %1261 = vmatprep.subr.mxu0 %v484
        %1262 = vmatpush1.msra.mxu0 %v483
        %1263 = vmatprep.subr.mxu0 %v486
        %1264 = vmatpush1.msra.mxu0 %v485
        %1265 = vmatprep.subr.mxu0 %v488
        %1266 = vmatpush1.msra.mxu0 %v487
        %1267 = vmatprep.subr.mxu0 %v490
        %1268 = vmatpush1.msra.mxu0 %v489
        %1269 = vmatprep.subr.mxu0 %v492
        %1270 = vmatpush1.msra.mxu0 %v491
        %1271 = vmatprep.subr.mxu0 %v494
        %1272 = vmatpush1.msra.mxu0 %v493
        %1273 = vmatprep.subr.mxu0 %v496
        %1274 = vmatpush1.msra.mxu0 %v495
        %1275 = vmatprep.subr.mxu0 %v498
        %1276 = vmatpush1.msra.mxu0 %v497
        %1277 = vmatprep.subr.mxu0 %v500
        %1278 = vmatpush1.msra.mxu0 %v499
        %1279 = vmatprep.subr.mxu0 %v502
        %1280 = vmatpush1.msra.mxu0 %v501
        %1281 = vmatprep.subr.mxu0 %v504
        %1282 = vmatpush1.msra.mxu0 %v503
        %1283 = vmatprep.subr.mxu0 %v506
        %1284 = vmatpush1.msra.mxu0 %v505
        %1285 = vmatprep.subr.mxu0 %v508
        %1286 = vmatpush1.msra.mxu0 %v507
        %1287 = vmatprep.subr.mxu0 %v510
        %1288 = vmatpush1.msra.mxu0 %v509
        %1289 = vmatprep.subr.mxu0 %v512
        %1290 = vmatpush1.msra.mxu0 %v511
        %1291 = vmatprep.subr.mxu0 %v514
        %1292 = vmatpush1.msra.mxu0 %v513
        %1293 = vmatprep.subr.mxu0 %v516
        %1294 = vmatpush1.msra.mxu0 %v515
        %1295 = vmatprep.subr.mxu0 %v518
        %1296 = vmatpush1.msra.mxu0 %v517
        %1297 = vmatprep.subr.mxu0 %v520
        %1298 = vmatpush1.msra.mxu0 %v519
        %1299 = vmatprep.subr.mxu0 %v522
        %1300 = vmatpush1.msra.mxu0 %v521
        %1301 = vmatprep.subr.mxu0 %v524
        %1302 = vmatpush1.msra.mxu0 %v523
        %1303 = vmatprep.mubr.f32.mxu0 %v1224
        %1304 = vmatmul.mubr.f32.gmra.mrb[0].mxu0 %v1223
        %v1305 = vpop.f32.mrb[0].mxu0
        %v1306 = vadd.f32 %v1232, %v1305
        %v1307 = vpop.f32.mrb[0].mxu0
        %v1308 = vadd.f32 %v1232, %v1307
        %1309 = vmatprep.mubr.f32.mxu0 %v1227
        %1310 = vmatmul.mubr.f32.gmra.mrb[0].mxu0 %v1226
        %v1311 = vpop.f32.mrb[0].mxu0
        %v1312 = vadd.f32 %v1237, %v1311
        %v1313 = vpop.f32.mrb[0].mxu0
        %v1314 = vadd.f32 %v1237, %v1313
        %1315 = vdwg.mxu0
        %1316 = vmatprep.subr.mxu0 %v526
        %1317 = vmatpush1.msra.mxu0 %v525
        %1318 = vmatprep.subr.mxu0 %v528
        %1319 = vmatpush1.msra.mxu0 %v527
        %1320 = vmatprep.subr.mxu0 %v530
        %1321 = vmatpush1.msra.mxu0 %v529
        %1322 = vmatprep.subr.mxu0 %v532
        %1323 = vmatpush1.msra.mxu0 %v531
        %1324 = vmatprep.subr.mxu0 %v534
        %1325 = vmatpush1.msra.mxu0 %v533
        %1326 = vmatprep.subr.mxu0 %v536
        %1327 = vmatpush1.msra.mxu0 %v535
        %1328 = vmatprep.subr.mxu0 %v538
        %1329 = vmatpush1.msra.mxu0 %v537
        %1330 = vmatprep.subr.mxu0 %v540
        %1331 = vmatpush1.msra.mxu0 %v539
        %1332 = vmatprep.subr.mxu0 %v542
        %1333 = vmatpush1.msra.mxu0 %v541
        %1334 = vmatprep.subr.mxu0 %v544
        %1335 = vmatpush1.msra.mxu0 %v543
        %1336 = vmatprep.subr.mxu0 %v546
        %1337 = vmatpush1.msra.mxu0 %v545
        %1338 = vmatprep.subr.mxu0 %v548
        %1339 = vmatpush1.msra.mxu0 %v547
        %1340 = vmatprep.subr.mxu0 %v550
        %1341 = vmatpush1.msra.mxu0 %v549
        %1342 = vmatprep.subr.mxu0 %v552
        %1343 = vmatpush1.msra.mxu0 %v551
        %1344 = vmatprep.subr.mxu0 %v554
        %1345 = vmatpush1.msra.mxu0 %v553
        %1346 = vmatprep.subr.mxu0 %v556
        %1347 = vmatpush1.msra.mxu0 %v555
        %1348 = vmatprep.subr.mxu0 0.0
        %1349 = vmatpush1.msra.mxu0 0.0
        %1350 = vmatprep.subr.mxu0 0.0
        %1351 = vmatpush1.msra.mxu0 0.0
        %1352 = vmatprep.subr.mxu0 0.0
        %1353 = vmatpush1.msra.mxu0 0.0
        %1354 = vmatprep.subr.mxu0 0.0
        %1355 = vmatpush1.msra.mxu0 0.0
        %1356 = vmatprep.subr.mxu0 0.0
        %1357 = vmatpush1.msra.mxu0 0.0
        %1358 = vmatprep.subr.mxu0 0.0
        %1359 = vmatpush1.msra.mxu0 0.0
        %1360 = vmatprep.subr.mxu0 0.0
        %1361 = vmatpush1.msra.mxu0 0.0
        %1362 = vmatprep.subr.mxu0 0.0
        %1363 = vmatpush1.msra.mxu0 0.0
        %1364 = vmatprep.subr.mxu0 0.0
        %1365 = vmatpush1.msra.mxu0 0.0
        %1366 = vmatprep.subr.mxu0 0.0
        %1367 = vmatpush1.msra.mxu0 0.0
        %1368 = vmatprep.subr.mxu0 0.0
        %1369 = vmatpush1.msra.mxu0 0.0
        %1370 = vmatprep.subr.mxu0 0.0
        %1371 = vmatpush1.msra.mxu0 0.0
        %1372 = vmatprep.subr.mxu0 0.0
        %1373 = vmatpush1.msra.mxu0 0.0
        %1374 = vmatprep.subr.mxu0 0.0
        %1375 = vmatpush1.msra.mxu0 0.0
        %1376 = vmatprep.subr.mxu0 0.0
        %1377 = vmatpush1.msra.mxu0 0.0
        %1378 = vmatprep.subr.mxu0 0.0
        %1379 = vmatpush1.msra.mxu0 0.0
        %1380 = vmatprep.mubr.f32.mxu0 0.0
        %1381 = vmatmul.mubr.f32.gmra.mrb[0].mxu0 %v1225
        %v1382 = vpop.f32.mrb[0].mxu0
        %v1383 = vadd.f32 %v1306, %v1382
        %v1384 = vpop.f32.mrb[0].mxu0
        %v1385 = vadd.f32 %v1308, %v1384
        %1386 = vmatprep.mubr.f32.mxu0 0.0
        %1387 = vmatmul.mubr.f32.gmra.mrb[0].mxu0 %v1228
        %v1388 = vpop.f32.mrb[0].mxu0
        %v1389 = vadd.f32 %v1312, %v1388
        %v1390 = vpop.f32.mrb[0].mxu0
        %v1391 = vadd.f32 %v1314, %v1390
        %1392 = vdwg.mxu0
        %v1393 = vadd.f32 %v1383, 3.0
        %v1394 = vadd.f32 %v1385, 3.0
        %v1395 = vadd.f32 %v1389, 3.0
        %v1396 = vadd.f32 %v1391, 3.0
        %v1397 = vmax.f32 %v1393, 0.0
        %v1398 = vmax.f32 %v1394, 0.0
        %v1399 = vmax.f32 %v1395, 0.0
        %v1400 = vmax.f32 %v1396, 0.0
        %v1401 = vmin.f32 %v1397, 6.0
        %v1402 = vmin.f32 %v1398, 6.0
        %v1403 = vmin.f32 %v1399, 6.0
        %v1404 = vmin.f32 %v1400, 6.0
        %v1405 = vmul.f32 %v1383, %v1401
        %v1406 = vmul.f32 %v1385, %v1402
        %v1407 = vmul.f32 %v1389, %v1403
        %v1408 = vmul.f32 %v1391, %v1404
        %v1409 = vmul.f32 %v1405, 0.16666667
        %v1410 = vmul.f32 %v1406, 0.16666667
        %v1411 = vmul.f32 %v1407, 0.16666667
        %v1412 = vmul.f32 %v1408, 0.16666667
        %1414 = vset.pattern.permute.xlu0 0
        %1415 = vperm.xlu0 %1414, %v562
        %v1416 = vpop.permute.xlu0 %1415
        %vm1418 = vcmask 130048
        %v1420 = vsel %vm1418, %v561, 0
        %1422 = vmatprep.subr.mxu0 %v1410
        %1423 = vmatpush1.msra.mxu0 %v1409
        %1424 = vmatprep.subr.mxu0 %v1412
        %1425 = vmatpush1.msra.mxu0 %v1411
        %1426 = vmatprep.subr.mxu0 0.0
        %1427 = vmatpush1.msra.mxu0 0.0
        %1428 = vmatprep.subr.mxu0 0.0
        %1429 = vmatpush1.msra.mxu0 0.0
        %1430 = vmatprep.subr.mxu0 0.0
        %1431 = vmatpush1.msra.mxu0 0.0
        %1432 = vmatprep.subr.mxu0 0.0
        %1433 = vmatpush1.msra.mxu0 0.0
        %1434 = vmatprep.subr.mxu0 0.0
        %1435 = vmatpush1.msra.mxu0 0.0
        %1436 = vmatprep.subr.mxu0 0.0
        %1437 = vmatpush1.msra.mxu0 0.0
        %1438 = vmatprep.subr.mxu0 0.0
        %1439 = vmatpush1.msra.mxu0 0.0
        %1440 = vmatprep.subr.mxu0 0.0
        %1441 = vmatpush1.msra.mxu0 0.0
        %1442 = vmatprep.subr.mxu0 0.0
        %1443 = vmatpush1.msra.mxu0 0.0
        %1444 = vmatprep.subr.mxu0 0.0
        %1445 = vmatpush1.msra.mxu0 0.0
        %1446 = vmatprep.subr.mxu0 0.0
        %1447 = vmatpush1.msra.mxu0 0.0
        %1448 = vmatprep.subr.mxu0 0.0
        %1449 = vmatpush1.msra.mxu0 0.0
        %1450 = vmatprep.subr.mxu0 0.0
        %1451 = vmatpush1.msra.mxu0 0.0
        %1452 = vmatprep.subr.mxu0 0.0
        %1453 = vmatpush1.msra.mxu0 0.0
        %1454 = vmatprep.subr.mxu0 0.0
        %1455 = vmatpush1.msra.mxu0 0.0
        %1456 = vmatprep.subr.mxu0 0.0
        %1457 = vmatpush1.msra.mxu0 0.0
        %1458 = vmatprep.subr.mxu0 0.0
        %1459 = vmatpush1.msra.mxu0 0.0
        %1460 = vmatprep.subr.mxu0 0.0
        %1461 = vmatpush1.msra.mxu0 0.0
        %1462 = vmatprep.subr.mxu0 0.0
        %1463 = vmatpush1.msra.mxu0 0.0
        %1464 = vmatprep.subr.mxu0 0.0
        %1465 = vmatpush1.msra.mxu0 0.0
        %1466 = vmatprep.subr.mxu0 0.0
        %1467 = vmatpush1.msra.mxu0 0.0
        %1468 = vmatprep.subr.mxu0 0.0
        %1469 = vmatpush1.msra.mxu0 0.0
        %1470 = vmatprep.subr.mxu0 0.0
        %1471 = vmatpush1.msra.mxu0 0.0
        %1472 = vmatprep.subr.mxu0 0.0
        %1473 = vmatpush1.msra.mxu0 0.0
        %1474 = vmatprep.subr.mxu0 0.0
        %1475 = vmatpush1.msra.mxu0 0.0
        %1476 = vmatprep.subr.mxu0 0.0
        %1477 = vmatpush1.msra.mxu0 0.0
        %1478 = vmatprep.subr.mxu0 0.0
        %1479 = vmatpush1.msra.mxu0 0.0
        %1480 = vmatprep.subr.mxu0 0.0
        %1481 = vmatpush1.msra.mxu0 0.0
        %1482 = vmatprep.subr.mxu0 0.0
        %1483 = vmatpush1.msra.mxu0 0.0
        %1484 = vmatprep.subr.mxu0 0.0
        %1485 = vmatpush1.msra.mxu0 0.0
        %1486 = vmatprep.mubr.f32.mxu0 0.0
        %1487 = vmatmul.mubr.f32.gmra.mrb[0].mxu0 %v1420
        %v1488 = vpop.f32.mrb[0].mxu0
        %v1489 = vadd.f32 %v1416, %v1488
        %v1490 = vpop.f32.mrb[0].mxu0
        %v1491 = vadd.f32 %v1416, %v1490
        %1492 = vdwg.mxu0
        %v1493 = vadd.f32 %v1489, %v563
        %v1494 = vadd.f32 %v1491, %v564
        %1495 = vst [vmem:[%s355] sm:$0xff] %v1493
        %1496 = vst [vmem:[%s355 + $0x8] sm:$0xff] %v1494
        %s1497 = sand.u32 %s227, 1
        %s1498 = scalar_lea.sflag [#allocation4], %s1497
        %s1499 = sand.u32 %s227, 1
        %s1500 = smul.addr %s1499, 16
        %s1501 = scalar_lea.vmem [#allocation7], %s1500
        // Predicated region
        $region65: #{tpu_custom_call.1} parent=55 // pred_check
          %p1502 = pneg %p237
        $region66: #{tpu_custom_call.1} parent=55 // pred_check_branch
          %1504 = sbr.rel (%p1502) target = $region68
        $region67: #{tpu_custom_call.1} parent=55 // pred_region
          %s1506 = ssub.s32 256, 256
          %1507 = vsyncadd %s1498, %s1506
          %s1508 = smul.addr %s25, 2
          %s1509 = smul.addr %s1508, 128
          %s1510 = scalar_lea.hbm %s9, %s1509
          %s1512 = sshll.u32 %s1501, 4
          %s1513 = int_to_ptr.vmem [resolvable:$true] %s1512
          %1515 = dma.vmem_to_hbm [thread:$0]  %s1513, 256, %s1510, %s1498
        $region68: #{tpu_custom_call.1} parent=55 // pred_fallthru
          _
      $region56: #{tpu_custom_call.1} parent=5 // pred_fallthru
        _
      %p1516 = scmp.le.s32.totalorder 2, %s20
      // Predicated region
      $region69: #{tpu_custom_call.1} parent=5 // pred_check
        %p1517 = pneg %p1516
      $region70: #{tpu_custom_call.1} parent=5 // pred_check_branch
        %1519 = sbr.rel (%p1517) target = $region72
      $region71: #{tpu_custom_call.1} parent=5 // pred_region
        %s1520 = ssub.s32 %s20, 2
        // Predicated region
        $region73: #{tpu_custom_call.1} parent=71 // pred_check
          %p1521 = pneg %p243
        $region74: #{tpu_custom_call.1} parent=71 // pred_check_branch
          %1523 = sbr.rel (%p1521) target = $region76
        $region75: #{tpu_custom_call.1} parent=71 // pred_region
          %s1524 = sand.u32 %s228, 1
          %s1525 = scalar_lea.sflag [#allocation4], %s1524
          %s1526 = sand.u32 %s228, 1
          %s1527 = smul.addr %s1526, 16
          %s1528 = scalar_lea.vmem [#allocation7], %s1527
          %1529 = dma.done %s1525, 256
        $region76: #{tpu_custom_call.1} parent=71 // pred_fallthru
          _
      $region72: #{tpu_custom_call.1} parent=5 // pred_fallthru
        _
    $region6: #{tpu_custom_call.1} parent=1 // loop_footer
      %s24 = sadd.s32 1, %s20
    $region7: #{tpu_custom_call.1} parent=1 // loop_footer_branch
      %19 = sbr.rel target = $region3
    $region8: #{tpu_custom_call.1} parent=1 // loop_exit
      _
    %1530 = vsyncpa [#allocation3], 1
    %s1531 = scalar_lea.sflag [#allocation3], 1
    %1532 = vsyncpa %s1531, 1
    %1533 = vsyncpa [#allocation6], 1
    %1534 = vsyncpa [#allocation4], 1
    %s1535 = scalar_lea.sflag [#allocation4], 1
    %1536 = vsyncpa %s1535, 1

</llo_original>
